<compile_context>
chip_gen: v6e
topology: v6e:2x2x1
jax: 0.10.0
libtpu: 0.0.40
codegen_flags: <defaults>
</compile_context>

<pallas_src>
import functools

import numpy as np

import jax
import jax.numpy as jnp
from jax.experimental import pallas as pl
from jax.experimental.pallas import tpu as pltpu


def _round_up(v, m):
    return (v + m - 1) // m * m


# -----------------------------------------------------------------------------
# Pallas kernel.  grid = (N // NB,): one "parallel" axis over batch blocks.
#   x_ref  : (NB, H, W*Cin)          bf16
#   w1_ref : (K, W*Cin, Wo*Cmid_p)   bf16   row-matricised fc1 weight (resident)
#   b1_ref : (1, Wo*Cmid_p)          f32    fc1 bias tiled per output column
#   w2_ref : (Cmid_p, Cout_p)        bf16   1x1 conv == matmul (resident)
#   b2_ref : (1, Cout_p)             f32
#   o_ref  : (Ho*Wo, NB, Cout_p)     f32    position-major output block
# -----------------------------------------------------------------------------
def _conv_mlp_kernel(x_ref, w1_ref, b1_ref, w2_ref, b2_ref, o_ref,
                     *, k, ho, wo, cmid_p):
    nb = x_ref.shape[0]
    wocm = w1_ref.shape[2]              # Wo * Cmid_p

    # Hoist resident operands / biases out of all loops.
    w2 = w2_ref[...]                    # (Cmid_p, Cout_p) bf16
    b1 = b1_ref[...]                    # (1, Wo*Cmid_p)   f32
    b2 = b2_ref[...]                    # (1, Cout_p)      f32

    # Ho / Wo / K are tiny in the classifier-head regime -> static unroll.
    # TODO(synk): for large spatial extents switch to lax.fori_loop(unroll=True)
    #             to bound compile time / vreg pressure.
    for oh in range(ho):
        # fc1: one matmul per kernel row, contraction = W*Cin (kw taps packed
        # with channels), M = NB batch rows, accumulated in f32.
        acc = jnp.zeros((nb, wocm), jnp.float32)
        for t in range(k):
            xs = x_ref[:, oh + t, :]                       # (NB, W*Cin) bf16
            acc = acc + jnp.dot(xs, w1_ref[t],
                                preferred_element_type=jnp.float32)

        # fc1 bias + ReLU (drop1: identity in eval mode).
        hid = jnp.maximum(acc + b1, 0.0)                   # (NB, Wo*Cmid_p) f32

        # fc2 (1x1 conv == matmul) + bias + ReLU (drop2: identity), one
        # lane-aligned Cmid_p slice / matmul per output column.
        for ow in range(wo):
            hs = hid[:, ow * cmid_p:(ow + 1) * cmid_p].astype(jnp.bfloat16)
            y = jnp.dot(hs, w2, preferred_element_type=jnp.float32)
            y = jnp.maximum(y + b2, 0.0)                   # (NB, Cout_p) f32
            o_ref[oh * wo + ow] = y.astype(o_ref.dtype)


# -----------------------------------------------------------------------------
# One-time weight packing (outside the jitted forward).
#   w1: (Cmid, Cin, K, K), b1: (Cmid,), w2: (Cout, Cmid, 1, 1), b2: (Cout,)
# The fc1 weight is "row-matricised" and specialised to the input width W of
# the classifier head:
#   W1row[t, w*Cin + c, ow*Cmid_p + cm] = w1[cm, c, t, w - ow]  (0 <= w-ow < K)
# so each kernel row is a single (NB, W*Cin) @ (W*Cin, Wo*Cmid_p) matmul.
# -----------------------------------------------------------------------------
def pack_conv_mlp_params(w1, b1, w2, b2, *, h, w):
    w1 = np.asarray(w1, np.float32)
    b1 = np.asarray(b1, np.float32)
    w2 = np.asarray(w2, np.float32)
    b2 = np.asarray(b2, np.float32)

    cmid, cin, k, _ = w1.shape
    cout = w2.shape[0]
    ho, wo = h - k + 1, w - k + 1
    del ho  # packing only depends on the width
    cmid_p = _round_up(cmid, 128)
    cout_p = _round_up(cout, 128)
    wc = w * cin

    # fc1: (Cmid, Cin, kh, kw) -> (K, W*Cin, Wo*Cmid_p), bf16, zero elsewhere.
    w1_t = np.transpose(w1, (2, 3, 1, 0))                  # (kh, kw, Cin, Cmid)
    w1r = np.zeros((k, wc, wo * cmid_p), np.float32)
    for t in range(k):
        for ow in range(wo):
            for j in range(k):
                wi = ow + j
                w1r[t, wi * cin:(wi + 1) * cin,
                    ow * cmid_p:ow * cmid_p + cmid] = w1_t[t, j]
    w1r = jnp.asarray(w1r, jnp.bfloat16)

    # fc1 bias tiled per output-column block (padded lanes stay 0).
    b1r = np.zeros((1, wo * cmid_p), np.float32)
    for ow in range(wo):
        b1r[0, ow * cmid_p:ow * cmid_p + cmid] = b1
    b1r = jnp.asarray(b1r)

    # fc2: (Cout, Cmid, 1, 1) -> (Cmid_p, Cout_p), bf16, zero-padded.
    w2r = np.zeros((cmid_p, cout_p), np.float32)
    w2r[:cmid, :cout] = w2.reshape(cout, cmid).T
    w2r = jnp.asarray(w2r, jnp.bfloat16)

    b2r = np.zeros((1, cout_p), np.float32)
    b2r[0, :cout] = b2
    b2r = jnp.asarray(b2r)
    return w1r, b1r, w2r, b2r


def _pick_batch_block(n, rows_per_elem, target_rows=256):
    """Batch block NB: as large as useful for MXU M-rows, always a legal
    output sublane block (NB == N, or NB a multiple of 8 dividing N)."""
    if n * rows_per_elem <= target_rows:
        return n
    best = None
    for cand in range(8, n, 8):
        if n % cand == 0 and cand * rows_per_elem <= target_rows:
            best = cand
    return best if best is not None else n


def _vmem_limit_bytes():
    """Per-generation VMEM budget with headroom (v7x has only 64 MiB)."""
    try:
        cap = pltpu.get_tpu_info().vmem_capacity_bytes
        return int(cap * 3 // 4) if cap else None
    except Exception:
        return None   # fall back to the compiler default


# -----------------------------------------------------------------------------
# Forward.  x: (N, Cin, H, W) f32 (NCHW, PyTorch).  Packed params from
# pack_conv_mlp_params.  Returns (N, Cout, H-K+1, W-K+1) f32 (NCHW).
# -----------------------------------------------------------------------------
@functools.partial(jax.jit, static_argnames=("kernel_size", "out_features"))
def conv_mlp_forward(x, w1r, b1r, w2r, b2r, *, kernel_size, out_features):
    n, cin, h, w = x.shape
    k = kernel_size
    ho, wo = h - k + 1, w - k + 1
    p = ho * wo
    wc = w * cin
    wocmid_p = w1r.shape[2]
    cmid_p = w2r.shape[0]
    cout_p = w2r.shape[1]

    # NCHW f32 -> (N, H, W*Cin) bf16: single fused transpose/cast/reshape,
    # no channel padding (taps are packed with channels in the weights).
    xr = jnp.transpose(x, (0, 2, 3, 1)).astype(jnp.bfloat16).reshape(n, h, wc)

    nb = _pick_batch_block(n, p)
    grid = (n // nb,)

    kernel = functools.partial(_conv_mlp_kernel, k=k, ho=ho, wo=wo,
                               cmid_p=cmid_p)

    flops = 2 * n * ho * k * wc * wocmid_p + 2 * n * p * cmid_p * cout_p
    bytes_accessed = (xr.size * 2 + w1r.size * 2 + w2r.size * 2
                      + (b1r.size + b2r.size) * 4 + p * n * cout_p * 4)

    vmem_limit = _vmem_limit_bytes()
    cp_kwargs = {"vmem_limit_bytes": vmem_limit} if vmem_limit else {}

    out = pl.pallas_call(
        kernel,
        out_shape=jax.ShapeDtypeStruct((p, n, cout_p), jnp.float32),
        grid=grid,
        in_specs=[
            # x: one batch block per grid step.
            pl.BlockSpec((nb, h, wc), lambda b: (b, 0, 0)),
            # w1 / biases / w2: resident (constant index_map).
            pl.BlockSpec((k, wc, wocmid_p), lambda b: (0, 0, 0)),
            pl.BlockSpec((1, wocmid_p), lambda b: (0, 0)),
            pl.BlockSpec((cmid_p, cout_p), lambda b: (0, 0)),
            pl.BlockSpec((1, cout_p), lambda b: (0, 0)),
        ],
        out_specs=pl.BlockSpec((p, nb, cout_p), lambda b: (0, b, 0)),
        compiler_params=pltpu.CompilerParams(
            dimension_semantics=("parallel",), **cp_kwargs),
        cost_estimate=pl.CostEstimate(flops=flops, transcendentals=0,
                                      bytes_accessed=bytes_accessed),
    )(xr, w1r, b1r, w2r, b2r)

    # (Ho*Wo, N, Cout_p) -> (N, Cout, Ho, Wo), dropping channel padding.
    out = out[:, :, :out_features].reshape(ho, wo, n, out_features)
    return jnp.transpose(out, (2, 3, 0, 1))


# -----------------------------------------------------------------------------
# Reference (lax conv, same bf16-operand / f32-accumulate precision).
# -----------------------------------------------------------------------------
def _reference(x, w1, b1, w2, b2):
    xb = x.astype(jnp.bfloat16)
    w1b = w1.astype(jnp.bfloat16)
    w2b = w2.astype(jnp.bfloat16)
    y = jax.lax.conv_general_dilated(
        xb, w1b, window_strides=(1, 1), padding="VALID",
        dimension_numbers=("NCHW", "OIHW", "NCHW"),
        preferred_element_type=jnp.float32)
    y = jnp.maximum(y + b1.reshape(1, -1, 1, 1), 0.0)
    y = jax.lax.conv_general_dilated(
        y.astype(jnp.bfloat16), w2b, window_strides=(1, 1), padding="VALID",
        dimension_numbers=("NCHW", "OIHW", "NCHW"),
        preferred_element_type=jnp.float32)
    y = jnp.maximum(y + b2.reshape(1, -1, 1, 1), 0.0)
    return y


if __name__ == "__main__":
    # Small shapes consistent with ConvMlp(in_features, out_features, kernel_size=7).
    N, CIN, H, W = 2, 8, 8, 8
    K = 7
    COUT = 32
    MLP_RATIO = 1.0
    CMID = int(COUT * MLP_RATIO)

    key = jax.random.PRNGKey(0)
    kx, kw1, kb1, kw2, kb2 = jax.random.split(key, 5)

    x = jax.random.normal(kx, (N, CIN, H, W), dtype=jnp.float32)
    w1 = jax.random.normal(kw1, (CMID, CIN, K, K), dtype=jnp.float32) * 0.05
    b1 = jax.random.normal(kb1, (CMID,), dtype=jnp.float32) * 0.05
    w2 = jax.random.normal(kw2, (COUT, CMID, 1, 1), dtype=jnp.float32) * 0.05
    b2 = jax.random.normal(kb2, (COUT,), dtype=jnp.float32) * 0.05

    # Pack weights ONCE (outside the jitted per-call forward).
    w1r, b1r, w2r, b2r = pack_conv_mlp_params(w1, b1, w2, b2, h=H, w=W)

    out = conv_mlp_forward(x, w1r, b1r, w2r, b2r,
                           kernel_size=K, out_features=COUT)
    out = jax.block_until_ready(out)

    ref = jax.block_until_ready(_reference(x, w1, b1, w2, b2))
    assert out.shape == (N, COUT, H - K + 1, W - K + 1), out.shape
    err = float(jnp.max(jnp.abs(out - ref)))
    assert jnp.allclose(out, ref, atol=2e-2, rtol=2e-2), f"mismatch, max err {err}"

    print("KERNEL_OK")
</pallas_src>

<mosaic_0001>
module attributes {stable_mosaic.version = 11 : i64} {
  func.func @_conv_mlp_kernel(%arg0: i32, %arg1: memref<2x8x64xbf16, #tpu.memory_space<vmem>>, %arg2: memref<7x64x256xbf16, #tpu.memory_space<vmem>>, %arg3: memref<1x256xf32, #tpu.memory_space<vmem>>, %arg4: memref<128x128xbf16, #tpu.memory_space<vmem>>, %arg5: memref<1x128xf32, #tpu.memory_space<vmem>>, %arg6: memref<4x2x128xf32, #tpu.memory_space<vmem>>) attributes {dimension_semantics = [#tpu.dimension_semantics<parallel>], iteration_bounds = array<i64: 1>, scalar_prefetch = 0 : i64, scratch_operands = 0 : i64, tpu.core_type = #tpu.core_type<tc>, window_params = [{transform_indices = @transform_0, window_bounds = array<i64: 2, 8, 64>}, {pipeline_mode = #tpu.pipeline_mode<synchronous>, transform_indices = @transform_1, window_bounds = array<i64: 7, 64, 256>}, {pipeline_mode = #tpu.pipeline_mode<synchronous>, transform_indices = @transform_2, window_bounds = array<i64: 1, 256>}, {pipeline_mode = #tpu.pipeline_mode<synchronous>, transform_indices = @transform_3, window_bounds = array<i64: 128, 128>}, {pipeline_mode = #tpu.pipeline_mode<synchronous>, transform_indices = @transform_4, window_bounds = array<i64: 1, 128>}, {transform_indices = @transform_5, window_bounds = array<i64: 4, 2, 128>}]} {
    %c0 = arith.constant 0 : index
    %c0_0 = arith.constant 0 : index
    %0 = vector.load %arg4[%c0, %c0_0] : memref<128x128xbf16, #tpu.memory_space<vmem>>, vector<128x128xbf16>
    %c0_1 = arith.constant 0 : index
    %c0_2 = arith.constant 0 : index
    %1 = vector.load %arg3[%c0_1, %c0_2] : memref<1x256xf32, #tpu.memory_space<vmem>>, vector<1x256xf32>
    %c0_3 = arith.constant 0 : index
    %c0_4 = arith.constant 0 : index
    %2 = vector.load %arg5[%c0_3, %c0_4] : memref<1x128xf32, #tpu.memory_space<vmem>>, vector<1x128xf32>
    %cst = arith.constant 0.000000e+00 : f32
    %3 = vector.broadcast %cst : f32 to vector<2x256xf32>
    %c0_5 = arith.constant 0 : index
    %c0_6 = arith.constant 0 : index
    %c0_7 = arith.constant 0 : index
    %4 = vector.load %arg1[%c0_5, %c0_6, %c0_7] : memref<2x8x64xbf16, #tpu.memory_space<vmem>>, vector<2x1x64xbf16>
    %5 = vector.shape_cast %4 : vector<2x1x64xbf16> to vector<2x64xbf16>
    %c0_8 = arith.constant 0 : index
    %c0_9 = arith.constant 0 : index
    %c0_10 = arith.constant 0 : index
    %6 = vector.load %arg2[%c0_8, %c0_9, %c0_10] : memref<7x64x256xbf16, #tpu.memory_space<vmem>>, vector<1x64x256xbf16>
    %7 = vector.shape_cast %6 : vector<1x64x256xbf16> to vector<64x256xbf16>
    %cst_11 = arith.constant dense<0.000000e+00> : vector<2x256xf32>
    %8 = tpu.matmul %5, %7, %cst_11 {dimension_numbers = #tpu.dot_dimension_numbers<[1], [0], [0], [1], [0, 0, 1, 1], [], []>} : vector<2x64xbf16>, vector<64x256xbf16>, vector<2x256xf32> -> vector<2x256xf32>
    %9 = arith.addf %3, %8 : vector<2x256xf32>
    %c0_12 = arith.constant 0 : index
    %c1 = arith.constant 1 : index
    %c0_13 = arith.constant 0 : index
    %10 = vector.load %arg1[%c0_12, %c1, %c0_13] : memref<2x8x64xbf16, #tpu.memory_space<vmem>>, vector<2x1x64xbf16>
    %11 = vector.shape_cast %10 : vector<2x1x64xbf16> to vector<2x64xbf16>
    %c1_14 = arith.constant 1 : index
    %c0_15 = arith.constant 0 : index
    %c0_16 = arith.constant 0 : index
    %12 = vector.load %arg2[%c1_14, %c0_15, %c0_16] : memref<7x64x256xbf16, #tpu.memory_space<vmem>>, vector<1x64x256xbf16>
    %13 = vector.shape_cast %12 : vector<1x64x256xbf16> to vector<64x256xbf16>
    %cst_17 = arith.constant dense<0.000000e+00> : vector<2x256xf32>
    %14 = tpu.matmul %11, %13, %cst_17 {dimension_numbers = #tpu.dot_dimension_numbers<[1], [0], [0], [1], [0, 0, 1, 1], [], []>} : vector<2x64xbf16>, vector<64x256xbf16>, vector<2x256xf32> -> vector<2x256xf32>
    %15 = arith.addf %9, %14 : vector<2x256xf32>
    %c0_18 = arith.constant 0 : index
    %c2 = arith.constant 2 : index
    %c0_19 = arith.constant 0 : index
    %16 = vector.load %arg1[%c0_18, %c2, %c0_19] : memref<2x8x64xbf16, #tpu.memory_space<vmem>>, vector<2x1x64xbf16>
    %17 = vector.shape_cast %16 : vector<2x1x64xbf16> to vector<2x64xbf16>
    %c2_20 = arith.constant 2 : index
    %c0_21 = arith.constant 0 : index
    %c0_22 = arith.constant 0 : index
    %18 = vector.load %arg2[%c2_20, %c0_21, %c0_22] : memref<7x64x256xbf16, #tpu.memory_space<vmem>>, vector<1x64x256xbf16>
    %19 = vector.shape_cast %18 : vector<1x64x256xbf16> to vector<64x256xbf16>
    %cst_23 = arith.constant dense<0.000000e+00> : vector<2x256xf32>
    %20 = tpu.matmul %17, %19, %cst_23 {dimension_numbers = #tpu.dot_dimension_numbers<[1], [0], [0], [1], [0, 0, 1, 1], [], []>} : vector<2x64xbf16>, vector<64x256xbf16>, vector<2x256xf32> -> vector<2x256xf32>
    %21 = arith.addf %15, %20 : vector<2x256xf32>
    %c0_24 = arith.constant 0 : index
    %c3 = arith.constant 3 : index
    %c0_25 = arith.constant 0 : index
    %22 = vector.load %arg1[%c0_24, %c3, %c0_25] : memref<2x8x64xbf16, #tpu.memory_space<vmem>>, vector<2x1x64xbf16>
    %23 = vector.shape_cast %22 : vector<2x1x64xbf16> to vector<2x64xbf16>
    %c3_26 = arith.constant 3 : index
    %c0_27 = arith.constant 0 : index
    %c0_28 = arith.constant 0 : index
    %24 = vector.load %arg2[%c3_26, %c0_27, %c0_28] : memref<7x64x256xbf16, #tpu.memory_space<vmem>>, vector<1x64x256xbf16>
    %25 = vector.shape_cast %24 : vector<1x64x256xbf16> to vector<64x256xbf16>
    %cst_29 = arith.constant dense<0.000000e+00> : vector<2x256xf32>
    %26 = tpu.matmul %23, %25, %cst_29 {dimension_numbers = #tpu.dot_dimension_numbers<[1], [0], [0], [1], [0, 0, 1, 1], [], []>} : vector<2x64xbf16>, vector<64x256xbf16>, vector<2x256xf32> -> vector<2x256xf32>
    %27 = arith.addf %21, %26 : vector<2x256xf32>
    %c0_30 = arith.constant 0 : index
    %c4 = arith.constant 4 : index
    %c0_31 = arith.constant 0 : index
    %28 = vector.load %arg1[%c0_30, %c4, %c0_31] : memref<2x8x64xbf16, #tpu.memory_space<vmem>>, vector<2x1x64xbf16>
    %29 = vector.shape_cast %28 : vector<2x1x64xbf16> to vector<2x64xbf16>
    %c4_32 = arith.constant 4 : index
    %c0_33 = arith.constant 0 : index
    %c0_34 = arith.constant 0 : index
    %30 = vector.load %arg2[%c4_32, %c0_33, %c0_34] : memref<7x64x256xbf16, #tpu.memory_space<vmem>>, vector<1x64x256xbf16>
    %31 = vector.shape_cast %30 : vector<1x64x256xbf16> to vector<64x256xbf16>
    %cst_35 = arith.constant dense<0.000000e+00> : vector<2x256xf32>
    %32 = tpu.matmul %29, %31, %cst_35 {dimension_numbers = #tpu.dot_dimension_numbers<[1], [0], [0], [1], [0, 0, 1, 1], [], []>} : vector<2x64xbf16>, vector<64x256xbf16>, vector<2x256xf32> -> vector<2x256xf32>
    %33 = arith.addf %27, %32 : vector<2x256xf32>
    %c0_36 = arith.constant 0 : index
    %c5 = arith.constant 5 : index
    %c0_37 = arith.constant 0 : index
    %34 = vector.load %arg1[%c0_36, %c5, %c0_37] : memref<2x8x64xbf16, #tpu.memory_space<vmem>>, vector<2x1x64xbf16>
    %35 = vector.shape_cast %34 : vector<2x1x64xbf16> to vector<2x64xbf16>
    %c5_38 = arith.constant 5 : index
    %c0_39 = arith.constant 0 : index
    %c0_40 = arith.constant 0 : index
    %36 = vector.load %arg2[%c5_38, %c0_39, %c0_40] : memref<7x64x256xbf16, #tpu.memory_space<vmem>>, vector<1x64x256xbf16>
    %37 = vector.shape_cast %36 : vector<1x64x256xbf16> to vector<64x256xbf16>
    %cst_41 = arith.constant dense<0.000000e+00> : vector<2x256xf32>
    %38 = tpu.matmul %35, %37, %cst_41 {dimension_numbers = #tpu.dot_dimension_numbers<[1], [0], [0], [1], [0, 0, 1, 1], [], []>} : vector<2x64xbf16>, vector<64x256xbf16>, vector<2x256xf32> -> vector<2x256xf32>
    %39 = arith.addf %33, %38 : vector<2x256xf32>
    %c0_42 = arith.constant 0 : index
    %c6 = arith.constant 6 : index
    %c0_43 = arith.constant 0 : index
    %40 = vector.load %arg1[%c0_42, %c6, %c0_43] : memref<2x8x64xbf16, #tpu.memory_space<vmem>>, vector<2x1x64xbf16>
    %41 = vector.shape_cast %40 : vector<2x1x64xbf16> to vector<2x64xbf16>
    %c6_44 = arith.constant 6 : index
    %c0_45 = arith.constant 0 : index
    %c0_46 = arith.constant 0 : index
    %42 = vector.load %arg2[%c6_44, %c0_45, %c0_46] : memref<7x64x256xbf16, #tpu.memory_space<vmem>>, vector<1x64x256xbf16>
    %43 = vector.shape_cast %42 : vector<1x64x256xbf16> to vector<64x256xbf16>
    %cst_47 = arith.constant dense<0.000000e+00> : vector<2x256xf32>
    %44 = tpu.matmul %41, %43, %cst_47 {dimension_numbers = #tpu.dot_dimension_numbers<[1], [0], [0], [1], [0, 0, 1, 1], [], []>} : vector<2x64xbf16>, vector<64x256xbf16>, vector<2x256xf32> -> vector<2x256xf32>
    %45 = arith.addf %39, %44 : vector<2x256xf32>
    %46 = vector.broadcast %1 : vector<1x256xf32> to vector<2x256xf32>
    %47 = arith.addf %45, %46 : vector<2x256xf32>
    %cst_48 = arith.constant 0.000000e+00 : f32
    %48 = vector.broadcast %cst_48 : f32 to vector<2x256xf32>
    %49 = arith.maximumf %47, %48 : vector<2x256xf32>
    %50 = vector.extract_strided_slice %49 {offsets = [0, 0], sizes = [2, 128], strides = [1, 1]} : vector<2x256xf32> to vector<2x128xf32>
    %51 = arith.truncf %50 : vector<2x128xf32> to vector<2x128xbf16>
    %cst_49 = arith.constant dense<0.000000e+00> : vector<2x128xf32>
    %52 = tpu.matmul %51, %0, %cst_49 {dimension_numbers = #tpu.dot_dimension_numbers<[1], [0], [0], [1], [0, 0, 1, 1], [], []>} : vector<2x128xbf16>, vector<128x128xbf16>, vector<2x128xf32> -> vector<2x128xf32>
    %53 = vector.broadcast %2 : vector<1x128xf32> to vector<2x128xf32>
    %54 = arith.addf %52, %53 : vector<2x128xf32>
    %cst_50 = arith.constant 0.000000e+00 : f32
    %55 = vector.broadcast %cst_50 : f32 to vector<2x128xf32>
    %56 = arith.maximumf %54, %55 : vector<2x128xf32>
    %c0_51 = arith.constant 0 : index
    %c0_52 = arith.constant 0 : index
    %c0_53 = arith.constant 0 : index
    %57 = vector.load %arg6[%c0_51, %c0_52, %c0_53] : memref<4x2x128xf32, #tpu.memory_space<vmem>>, vector<1x2x128xf32>
    %58 = vector.shape_cast %57 : vector<1x2x128xf32> to vector<2x128xf32>
    %59 = vector.shape_cast %56 : vector<2x128xf32> to vector<1x2x128xf32>
    tpu.vector_store %arg6[%c0_51, %c0_52, %c0_53], %59 {strides = array<i32>} : memref<4x2x128xf32, #tpu.memory_space<vmem>>, vector<1x2x128xf32>,
    %60 = vector.extract_strided_slice %49 {offsets = [0, 128], sizes = [2, 128], strides = [1, 1]} : vector<2x256xf32> to vector<2x128xf32>
    %61 = arith.truncf %60 : vector<2x128xf32> to vector<2x128xbf16>
    %cst_54 = arith.constant dense<0.000000e+00> : vector<2x128xf32>
    %62 = tpu.matmul %61, %0, %cst_54 {dimension_numbers = #tpu.dot_dimension_numbers<[1], [0], [0], [1], [0, 0, 1, 1], [], []>} : vector<2x128xbf16>, vector<128x128xbf16>, vector<2x128xf32> -> vector<2x128xf32>
    %63 = vector.broadcast %2 : vector<1x128xf32> to vector<2x128xf32>
    %64 = arith.addf %62, %63 : vector<2x128xf32>
    %cst_55 = arith.constant 0.000000e+00 : f32
    %65 = vector.broadcast %cst_55 : f32 to vector<2x128xf32>
    %66 = arith.maximumf %64, %65 : vector<2x128xf32>
    %c1_56 = arith.constant 1 : index
    %c0_57 = arith.constant 0 : index
    %c0_58 = arith.constant 0 : index
    %67 = vector.load %arg6[%c1_56, %c0_57, %c0_58] : memref<4x2x128xf32, #tpu.memory_space<vmem>>, vector<1x2x128xf32>
    %68 = vector.shape_cast %67 : vector<1x2x128xf32> to vector<2x128xf32>
    %69 = vector.shape_cast %66 : vector<2x128xf32> to vector<1x2x128xf32>
    tpu.vector_store %arg6[%c1_56, %c0_57, %c0_58], %69 {strides = array<i32>} : memref<4x2x128xf32, #tpu.memory_space<vmem>>, vector<1x2x128xf32>,
    %cst_59 = arith.constant 0.000000e+00 : f32
    %70 = vector.broadcast %cst_59 : f32 to vector<2x256xf32>
    %c0_60 = arith.constant 0 : index
    %c1_61 = arith.constant 1 : index
    %c0_62 = arith.constant 0 : index
    %71 = vector.load %arg1[%c0_60, %c1_61, %c0_62] : memref<2x8x64xbf16, #tpu.memory_space<vmem>>, vector<2x1x64xbf16>
    %72 = vector.shape_cast %71 : vector<2x1x64xbf16> to vector<2x64xbf16>
    %c0_63 = arith.constant 0 : index
    %c0_64 = arith.constant 0 : index
    %c0_65 = arith.constant 0 : index
    %73 = vector.load %arg2[%c0_63, %c0_64, %c0_65] : memref<7x64x256xbf16, #tpu.memory_space<vmem>>, vector<1x64x256xbf16>
    %74 = vector.shape_cast %73 : vector<1x64x256xbf16> to vector<64x256xbf16>
    %cst_66 = arith.constant dense<0.000000e+00> : vector<2x256xf32>
    %75 = tpu.matmul %72, %74, %cst_66 {dimension_numbers = #tpu.dot_dimension_numbers<[1], [0], [0], [1], [0, 0, 1, 1], [], []>} : vector<2x64xbf16>, vector<64x256xbf16>, vector<2x256xf32> -> vector<2x256xf32>
    %76 = arith.addf %70, %75 : vector<2x256xf32>
    %c0_67 = arith.constant 0 : index
    %c2_68 = arith.constant 2 : index
    %c0_69 = arith.constant 0 : index
    %77 = vector.load %arg1[%c0_67, %c2_68, %c0_69] : memref<2x8x64xbf16, #tpu.memory_space<vmem>>, vector<2x1x64xbf16>
    %78 = vector.shape_cast %77 : vector<2x1x64xbf16> to vector<2x64xbf16>
    %c1_70 = arith.constant 1 : index
    %c0_71 = arith.constant 0 : index
    %c0_72 = arith.constant 0 : index
    %79 = vector.load %arg2[%c1_70, %c0_71, %c0_72] : memref<7x64x256xbf16, #tpu.memory_space<vmem>>, vector<1x64x256xbf16>
    %80 = vector.shape_cast %79 : vector<1x64x256xbf16> to vector<64x256xbf16>
    %cst_73 = arith.constant dense<0.000000e+00> : vector<2x256xf32>
    %81 = tpu.matmul %78, %80, %cst_73 {dimension_numbers = #tpu.dot_dimension_numbers<[1], [0], [0], [1], [0, 0, 1, 1], [], []>} : vector<2x64xbf16>, vector<64x256xbf16>, vector<2x256xf32> -> vector<2x256xf32>
    %82 = arith.addf %76, %81 : vector<2x256xf32>
    %c0_74 = arith.constant 0 : index
    %c3_75 = arith.constant 3 : index
    %c0_76 = arith.constant 0 : index
    %83 = vector.load %arg1[%c0_74, %c3_75, %c0_76] : memref<2x8x64xbf16, #tpu.memory_space<vmem>>, vector<2x1x64xbf16>
    %84 = vector.shape_cast %83 : vector<2x1x64xbf16> to vector<2x64xbf16>
    %c2_77 = arith.constant 2 : index
    %c0_78 = arith.constant 0 : index
    %c0_79 = arith.constant 0 : index
    %85 = vector.load %arg2[%c2_77, %c0_78, %c0_79] : memref<7x64x256xbf16, #tpu.memory_space<vmem>>, vector<1x64x256xbf16>
    %86 = vector.shape_cast %85 : vector<1x64x256xbf16> to vector<64x256xbf16>
    %cst_80 = arith.constant dense<0.000000e+00> : vector<2x256xf32>
    %87 = tpu.matmul %84, %86, %cst_80 {dimension_numbers = #tpu.dot_dimension_numbers<[1], [0], [0], [1], [0, 0, 1, 1], [], []>} : vector<2x64xbf16>, vector<64x256xbf16>, vector<2x256xf32> -> vector<2x256xf32>
    %88 = arith.addf %82, %87 : vector<2x256xf32>
    %c0_81 = arith.constant 0 : index
    %c4_82 = arith.constant 4 : index
    %c0_83 = arith.constant 0 : index
    %89 = vector.load %arg1[%c0_81, %c4_82, %c0_83] : memref<2x8x64xbf16, #tpu.memory_space<vmem>>, vector<2x1x64xbf16>
    %90 = vector.shape_cast %89 : vector<2x1x64xbf16> to vector<2x64xbf16>
    %c3_84 = arith.constant 3 : index
    %c0_85 = arith.constant 0 : index
    %c0_86 = arith.constant 0 : index
    %91 = vector.load %arg2[%c3_84, %c0_85, %c0_86] : memref<7x64x256xbf16, #tpu.memory_space<vmem>>, vector<1x64x256xbf16>
    %92 = vector.shape_cast %91 : vector<1x64x256xbf16> to vector<64x256xbf16>
    %cst_87 = arith.constant dense<0.000000e+00> : vector<2x256xf32>
    %93 = tpu.matmul %90, %92, %cst_87 {dimension_numbers = #tpu.dot_dimension_numbers<[1], [0], [0], [1], [0, 0, 1, 1], [], []>} : vector<2x64xbf16>, vector<64x256xbf16>, vector<2x256xf32> -> vector<2x256xf32>
    %94 = arith.addf %88, %93 : vector<2x256xf32>
    %c0_88 = arith.constant 0 : index
    %c5_89 = arith.constant 5 : index
    %c0_90 = arith.constant 0 : index
    %95 = vector.load %arg1[%c0_88, %c5_89, %c0_90] : memref<2x8x64xbf16, #tpu.memory_space<vmem>>, vector<2x1x64xbf16>
    %96 = vector.shape_cast %95 : vector<2x1x64xbf16> to vector<2x64xbf16>
    %c4_91 = arith.constant 4 : index
    %c0_92 = arith.constant 0 : index
    %c0_93 = arith.constant 0 : index
    %97 = vector.load %arg2[%c4_91, %c0_92, %c0_93] : memref<7x64x256xbf16, #tpu.memory_space<vmem>>, vector<1x64x256xbf16>
    %98 = vector.shape_cast %97 : vector<1x64x256xbf16> to vector<64x256xbf16>
    %cst_94 = arith.constant dense<0.000000e+00> : vector<2x256xf32>
    %99 = tpu.matmul %96, %98, %cst_94 {dimension_numbers = #tpu.dot_dimension_numbers<[1], [0], [0], [1], [0, 0, 1, 1], [], []>} : vector<2x64xbf16>, vector<64x256xbf16>, vector<2x256xf32> -> vector<2x256xf32>
    %100 = arith.addf %94, %99 : vector<2x256xf32>
    %c0_95 = arith.constant 0 : index
    %c6_96 = arith.constant 6 : index
    %c0_97 = arith.constant 0 : index
    %101 = vector.load %arg1[%c0_95, %c6_96, %c0_97] : memref<2x8x64xbf16, #tpu.memory_space<vmem>>, vector<2x1x64xbf16>
    %102 = vector.shape_cast %101 : vector<2x1x64xbf16> to vector<2x64xbf16>
    %c5_98 = arith.constant 5 : index
    %c0_99 = arith.constant 0 : index
    %c0_100 = arith.constant 0 : index
    %103 = vector.load %arg2[%c5_98, %c0_99, %c0_100] : memref<7x64x256xbf16, #tpu.memory_space<vmem>>, vector<1x64x256xbf16>
    %104 = vector.shape_cast %103 : vector<1x64x256xbf16> to vector<64x256xbf16>
    %cst_101 = arith.constant dense<0.000000e+00> : vector<2x256xf32>
    %105 = tpu.matmul %102, %104, %cst_101 {dimension_numbers = #tpu.dot_dimension_numbers<[1], [0], [0], [1], [0, 0, 1, 1], [], []>} : vector<2x64xbf16>, vector<64x256xbf16>, vector<2x256xf32> -> vector<2x256xf32>
    %106 = arith.addf %100, %105 : vector<2x256xf32>
    %c0_102 = arith.constant 0 : index
    %c7 = arith.constant 7 : index
    %c0_103 = arith.constant 0 : index
    %107 = vector.load %arg1[%c0_102, %c7, %c0_103] : memref<2x8x64xbf16, #tpu.memory_space<vmem>>, vector<2x1x64xbf16>
    %108 = vector.shape_cast %107 : vector<2x1x64xbf16> to vector<2x64xbf16>
    %c6_104 = arith.constant 6 : index
    %c0_105 = arith.constant 0 : index
    %c0_106 = arith.constant 0 : index
    %109 = vector.load %arg2[%c6_104, %c0_105, %c0_106] : memref<7x64x256xbf16, #tpu.memory_space<vmem>>, vector<1x64x256xbf16>
    %110 = vector.shape_cast %109 : vector<1x64x256xbf16> to vector<64x256xbf16>
    %cst_107 = arith.constant dense<0.000000e+00> : vector<2x256xf32>
    %111 = tpu.matmul %108, %110, %cst_107 {dimension_numbers = #tpu.dot_dimension_numbers<[1], [0], [0], [1], [0, 0, 1, 1], [], []>} : vector<2x64xbf16>, vector<64x256xbf16>, vector<2x256xf32> -> vector<2x256xf32>
    %112 = arith.addf %106, %111 : vector<2x256xf32>
    %113 = vector.broadcast %1 : vector<1x256xf32> to vector<2x256xf32>
    %114 = arith.addf %112, %113 : vector<2x256xf32>
    %cst_108 = arith.constant 0.000000e+00 : f32
    %115 = vector.broadcast %cst_108 : f32 to vector<2x256xf32>
    %116 = arith.maximumf %114, %115 : vector<2x256xf32>
    %117 = vector.extract_strided_slice %116 {offsets = [0, 0], sizes = [2, 128], strides = [1, 1]} : vector<2x256xf32> to vector<2x128xf32>
    %118 = arith.truncf %117 : vector<2x128xf32> to vector<2x128xbf16>
    %cst_109 = arith.constant dense<0.000000e+00> : vector<2x128xf32>
    %119 = tpu.matmul %118, %0, %cst_109 {dimension_numbers = #tpu.dot_dimension_numbers<[1], [0], [0], [1], [0, 0, 1, 1], [], []>} : vector<2x128xbf16>, vector<128x128xbf16>, vector<2x128xf32> -> vector<2x128xf32>
    %120 = vector.broadcast %2 : vector<1x128xf32> to vector<2x128xf32>
    %121 = arith.addf %119, %120 : vector<2x128xf32>
    %cst_110 = arith.constant 0.000000e+00 : f32
    %122 = vector.broadcast %cst_110 : f32 to vector<2x128xf32>
    %123 = arith.maximumf %121, %122 : vector<2x128xf32>
    %c2_111 = arith.constant 2 : index
    %c0_112 = arith.constant 0 : index
    %c0_113 = arith.constant 0 : index
    %124 = vector.load %arg6[%c2_111, %c0_112, %c0_113] : memref<4x2x128xf32, #tpu.memory_space<vmem>>, vector<1x2x128xf32>
    %125 = vector.shape_cast %124 : vector<1x2x128xf32> to vector<2x128xf32>
    %126 = vector.shape_cast %123 : vector<2x128xf32> to vector<1x2x128xf32>
    tpu.vector_store %arg6[%c2_111, %c0_112, %c0_113], %126 {strides = array<i32>} : memref<4x2x128xf32, #tpu.memory_space<vmem>>, vector<1x2x128xf32>,
    %127 = vector.extract_strided_slice %116 {offsets = [0, 128], sizes = [2, 128], strides = [1, 1]} : vector<2x256xf32> to vector<2x128xf32>
    %128 = arith.truncf %127 : vector<2x128xf32> to vector<2x128xbf16>
    %cst_114 = arith.constant dense<0.000000e+00> : vector<2x128xf32>
    %129 = tpu.matmul %128, %0, %cst_114 {dimension_numbers = #tpu.dot_dimension_numbers<[1], [0], [0], [1], [0, 0, 1, 1], [], []>} : vector<2x128xbf16>, vector<128x128xbf16>, vector<2x128xf32> -> vector<2x128xf32>
    %130 = vector.broadcast %2 : vector<1x128xf32> to vector<2x128xf32>
    %131 = arith.addf %129, %130 : vector<2x128xf32>
    %cst_115 = arith.constant 0.000000e+00 : f32
    %132 = vector.broadcast %cst_115 : f32 to vector<2x128xf32>
    %133 = arith.maximumf %131, %132 : vector<2x128xf32>
    %c3_116 = arith.constant 3 : index
    %c0_117 = arith.constant 0 : index
    %c0_118 = arith.constant 0 : index
    %134 = vector.load %arg6[%c3_116, %c0_117, %c0_118] : memref<4x2x128xf32, #tpu.memory_space<vmem>>, vector<1x2x128xf32>
    %135 = vector.shape_cast %134 : vector<1x2x128xf32> to vector<2x128xf32>
    %136 = vector.shape_cast %133 : vector<2x128xf32> to vector<1x2x128xf32>
    tpu.vector_store %arg6[%c3_116, %c0_117, %c0_118], %136 {strides = array<i32>} : memref<4x2x128xf32, #tpu.memory_space<vmem>>, vector<1x2x128xf32>,
    return
  }
  func.func @transform_0(%arg0: i32) -> (i32, i32, i32) {
    %c0_i32 = arith.constant 0 : i32
    %c0_i32_0 = arith.constant 0 : i32
    %c0_i32_1 = arith.constant 0 : i32
    return %arg0, %c0_i32, %c0_i32_0 : i32, i32, i32
  }
  func.func @transform_1(%arg0: i32) -> (i32, i32, i32) {
    %c0_i32 = arith.constant 0 : i32
    %c0_i32_0 = arith.constant 0 : i32
    %c0_i32_1 = arith.constant 0 : i32
    %c0_i32_2 = arith.constant 0 : i32
    return %c0_i32, %c0_i32_0, %c0_i32_1 : i32, i32, i32
  }
  func.func @transform_2(%arg0: i32) -> (i32, i32) {
    %c0_i32 = arith.constant 0 : i32
    %c0_i32_0 = arith.constant 0 : i32
    %c0_i32_1 = arith.constant 0 : i32
    return %c0_i32, %c0_i32_0 : i32, i32
  }
  func.func @transform_3(%arg0: i32) -> (i32, i32) {
    %c0_i32 = arith.constant 0 : i32
    %c0_i32_0 = arith.constant 0 : i32
    %c0_i32_1 = arith.constant 0 : i32
    return %c0_i32, %c0_i32_0 : i32, i32
  }
  func.func @transform_4(%arg0: i32) -> (i32, i32) {
    %c0_i32 = arith.constant 0 : i32
    %c0_i32_0 = arith.constant 0 : i32
    %c0_i32_1 = arith.constant 0 : i32
    return %c0_i32, %c0_i32_0 : i32, i32
  }
  func.func @transform_5(%arg0: i32) -> (i32, i32, i32) {
    %c0_i32 = arith.constant 0 : i32
    %c0_i32_0 = arith.constant 0 : i32
    %c0_i32_1 = arith.constant 0 : i32
    return %c0_i32, %arg0, %c0_i32_0 : i32, i32, i32
  }
}

</mosaic_0001>

<llo_original>
// kernel: conv_mlp_forward.1
$region0: #{conv_mlp_forward.1}
  #allocation0 [shape = 'u32[]', space=smem, size = 0x4, offset = 0x4, fixed_abs, tag = 'smem constant byte address 0x4 - core index']
  #allocation1 [shape = 'u32[144,128]{1,0:T(1,128)}', space=vmem, size = 0x12000, scoped, tag = 'internal scratch']
  %s0 = inlined_call_operand.vmem [shape: bf16[2,8,64], index: 0, kind: input, shape index: {}]
  %s1 = inlined_call_operand.hbm [shape: bf16[7,64,256], index: 1, kind: input, shape index: {}]
  %s2 = inlined_call_operand.vmem [shape: f32[1,256], index: 2, kind: input, shape index: {}]
  %s3 = inlined_call_operand.vmem [shape: bf16[128,128], index: 3, kind: input, shape index: {}]
  %s4 = inlined_call_operand.vmem [shape: f32[1,128], index: 4, kind: input, shape index: {}]
  %s5 = inlined_call_operand.vmem [shape: f32[4,2,128], index: 5, kind: output, shape index: {}]
  %s6 = sld [smem:[#allocation0]]
  $region34: #{conv_mlp_forward.1} parent=0
    _
  %s8 = ssub.s32 1, %s6
  %s9 = scalar_select 0, %s8, %s6
  $region1: #{conv_mlp_forward.1} parent=0
    #allocation2 [shape = 'u8[229376]{0}', space=vmem, size = 0x38000, scoped, tag = 'input window, operand 1, single buffered']
    #allocation3 [shape = 's32[1]{0}', space=sflag, size = 0x4, scoped, tag = 'scoped memory for conv_mlp_forward.1']
    %10 = vsyncpa [#allocation3], 0
    // Predicated region
    $region2: #{conv_mlp_forward.1} parent=1 // pred_check
      _
    $region3: #{conv_mlp_forward.1} parent=1 // pred_check_branch
      %12 = sbr.rel (0) target = $region5
    $region4: #{conv_mlp_forward.1} parent=1 // pred_region
      _
    $region5: #{conv_mlp_forward.1} parent=1 // pred_fallthru
      _
    // Predicated region
    $region6: #{conv_mlp_forward.1} parent=1 // pred_check
      _
    $region7: #{conv_mlp_forward.1} parent=1 // pred_check_branch
      %14 = sbr.rel (0) target = $region9
    $region8: #{conv_mlp_forward.1} parent=1 // pred_region
      %s16 = ssub.s32 7168, 7168
      %17 = vsyncadd [#allocation3], %s16
      %s18 = sshll.u32 [#allocation2], 4
      %s19 = int_to_ptr.vmem [resolvable:$true] %s18
      %24 = dma.hbm_to_vmem [thread:$0]  %s1, 7168, %s19, [#allocation3], 128, 128, 8
    $region9: #{conv_mlp_forward.1} parent=1 // pred_fallthru
      _
    // Predicated region
    $region10: #{conv_mlp_forward.1} parent=1 // pred_check
      _
    $region11: #{conv_mlp_forward.1} parent=1 // pred_check_branch
      %26 = sbr.rel (0) target = $region13
    $region12: #{conv_mlp_forward.1} parent=1 // pred_region
      _
    $region13: #{conv_mlp_forward.1} parent=1 // pred_fallthru
      _
    // Predicated region
    $region14: #{conv_mlp_forward.1} parent=1 // pred_check
      _
    $region15: #{conv_mlp_forward.1} parent=1 // pred_check_branch
      %28 = sbr.rel (0) target = $region17
    $region16: #{conv_mlp_forward.1} parent=1 // pred_region
      _
    $region17: #{conv_mlp_forward.1} parent=1 // pred_fallthru
      _
    // Predicated region
    $region18: #{conv_mlp_forward.1} parent=1 // pred_check
      _
    $region19: #{conv_mlp_forward.1} parent=1 // pred_check_branch
      %30 = sbr.rel (0) target = $region21
    $region20: #{conv_mlp_forward.1} parent=1 // pred_region
      _
    $region21: #{conv_mlp_forward.1} parent=1 // pred_fallthru
      _
    // Predicated region
    $region22: #{conv_mlp_forward.1} parent=1 // pred_check
      _
    $region23: #{conv_mlp_forward.1} parent=1 // pred_check_branch
      %32 = sbr.rel (0) target = $region25
    $region24: #{conv_mlp_forward.1} parent=1 // pred_region
      %33 = dma.done [#allocation3], 7168
    $region25: #{conv_mlp_forward.1} parent=1 // pred_fallthru
      _
    %v35 = vld [vmem:[%s3] sm:$0xf]
    %v36 = vld [vmem:[%s3 + $0x4] sm:$0xf]
    %v37 = vld [vmem:[%s3 + $0x8] sm:$0xf]
    %v38 = vld [vmem:[%s3 + $0xc] sm:$0xf]
    %v39 = vld [vmem:[%s3 + $0x10] sm:$0xf]
    %v40 = vld [vmem:[%s3 + $0x14] sm:$0xf]
    %v41 = vld [vmem:[%s3 + $0x18] sm:$0xf]
    %v42 = vld [vmem:[%s3 + $0x1c] sm:$0xf]
    %v43 = vld [vmem:[%s3 + $0x20] sm:$0xf]
    %v44 = vld [vmem:[%s3 + $0x24] sm:$0xf]
    %v45 = vld [vmem:[%s3 + $0x28] sm:$0xf]
    %v46 = vld [vmem:[%s3 + $0x2c] sm:$0xf]
    %v47 = vld [vmem:[%s3 + $0x30] sm:$0xf]
    %v48 = vld [vmem:[%s3 + $0x34] sm:$0xf]
    %v49 = vld [vmem:[%s3 + $0x38] sm:$0xf]
    %v50 = vld [vmem:[%s3 + $0x3c] sm:$0xf]
    %v51 = vld [vmem:[%s2] sm:$0x3]
    %v52 = vld [vmem:[%s4] sm:$0x1]
    %v53 = vld [vmem:[%s0] sm:$0x1]
    %v54 = vld [vmem:[%s0 + $0x4] sm:$0x1]
    %v55 = vld [vmem:[#allocation2] sm:$0xff]
    %v56 = vld [vmem:[#allocation2 + $0x8] sm:$0xff]
    %v57 = vld [vmem:[#allocation2 + $0x10] sm:$0xff]
    %v58 = vld [vmem:[#allocation2 + $0x18] sm:$0xff]
    %v59 = vld [vmem:[#allocation2 + $0x20] sm:$0xff]
    %v60 = vld [vmem:[#allocation2 + $0x28] sm:$0xff]
    %v61 = vld [vmem:[#allocation2 + $0x30] sm:$0xff]
    %v62 = vld [vmem:[#allocation2 + $0x38] sm:$0xff]
    %s63 = scalar_lea.vmem [#allocation2], 64
    %v64 = vld [vmem:[%s63] sm:$0xff]
    %v65 = vld [vmem:[%s63 + $0x8] sm:$0xff]
    %v66 = vld [vmem:[%s63 + $0x10] sm:$0xff]
    %v67 = vld [vmem:[%s63 + $0x18] sm:$0xff]
    %v68 = vld [vmem:[%s63 + $0x20] sm:$0xff]
    %v69 = vld [vmem:[%s63 + $0x28] sm:$0xff]
    %v70 = vld [vmem:[%s63 + $0x30] sm:$0xff]
    %v71 = vld [vmem:[%s63 + $0x38] sm:$0xff]
    %v74 = vunpack.c.l.b16 %v53
    %v75 = vunpack.c.l.b16 %v54
    %v76 = vpack.c.b16 %v74, %v74
    %v77 = vpack.c.b16 %v75, %v75
    %v78 = vunpack.c.l.b16 %v76
    %v79 = vunpack.c.l.b16 %v77
    %v80 = vrot.slane %v78, 1
    %vm81 = vcmask 1041409
    %v82 = vsel %vm81, %v79, %v80
    %v83 = vpack.c.b16 %v82, %v82
    %v92 = vunpack.c.l.b16 %v64
    %v93 = vunpack.c.h.b16 %v64
    %v94 = vunpack.c.l.b16 %v65
    %v95 = vunpack.c.h.b16 %v65
    %v96 = vunpack.c.l.b16 %v66
    %v97 = vunpack.c.h.b16 %v66
    %v98 = vunpack.c.l.b16 %v67
    %v99 = vunpack.c.h.b16 %v67
    %v100 = vunpack.c.l.b16 %v68
    %v101 = vunpack.c.h.b16 %v68
    %v102 = vunpack.c.l.b16 %v69
    %v103 = vunpack.c.h.b16 %v69
    %v104 = vunpack.c.l.b16 %v70
    %v105 = vunpack.c.h.b16 %v70
    %v106 = vunpack.c.l.b16 %v71
    %v107 = vunpack.c.h.b16 %v71
    %v108 = vpack.c.b16 %v94, %v92
    %v109 = vpack.c.b16 %v95, %v93
    %v110 = vpack.c.b16 %v98, %v96
    %v111 = vpack.c.b16 %v99, %v97
    %v112 = vpack.c.b16 %v102, %v100
    %v113 = vpack.c.b16 %v103, %v101
    %v114 = vpack.c.b16 %v106, %v104
    %v115 = vpack.c.b16 %v107, %v105
    %vm124 = vcmask 523264
    %v126 = vsel %vm124, %v83, 0
    %128 = vmatprep.subr.bf16.mxu0 0
    %129 = vmatpush1.bf16.msra.mxu0 0
    %130 = vmatprep.subr.bf16.mxu0 0
    %131 = vmatpush1.bf16.msra.mxu0 0
    %132 = vmatprep.subr.bf16.mxu0 0
    %133 = vmatpush1.bf16.msra.mxu0 0
    %134 = vmatprep.subr.bf16.mxu0 0
    %135 = vmatpush1.bf16.msra.mxu0 0
    %136 = vmatprep.subr.bf16.mxu0 %v115
    %137 = vmatpush1.bf16.msra.mxu0 %v114
    %138 = vmatprep.subr.bf16.mxu0 %v113
    %139 = vmatpush1.bf16.msra.mxu0 %v112
    %140 = vmatprep.subr.bf16.mxu0 %v111
    %141 = vmatpush1.bf16.msra.mxu0 %v110
    %142 = vmatprep.subr.bf16.mxu0 %v109
    %143 = vmatpush1.bf16.msra.mxu0 %v108
    %144 = vmatprep.subr.bf16.mxu0 0
    %145 = vmatpush2.bf16.msra.mxu0 0
    %146 = vmatprep.subr.bf16.mxu0 0
    %147 = vmatpush2.bf16.msra.mxu0 0
    %148 = vmatprep.subr.bf16.mxu0 0
    %149 = vmatpush2.bf16.msra.mxu0 0
    %150 = vmatprep.subr.bf16.mxu0 0
    %151 = vmatpush2.bf16.msra.mxu0 0
    %152 = vmatprep.subr.bf16.mxu0 0
    %153 = vmatpush2.bf16.msra.mxu0 0
    %154 = vmatprep.subr.bf16.mxu0 0
    %155 = vmatpush2.bf16.msra.mxu0 0
    %156 = vmatprep.subr.bf16.mxu0 0
    %157 = vmatpush2.bf16.msra.mxu0 0
    %158 = vmatprep.subr.bf16.mxu0 0
    %159 = vmatpush2.bf16.msra.mxu0 0
    %160 = vmatprep.mubr.bf16.mxu0 0
    %161 = vmatmul.mubr.bf16.gmra.mxu0 %v126
    %v162 = vpop.f32.mrf.mxu0
    %v163 = vadd.f32 0.0, %v162
    %v164 = vpop.f32.mrf.mxu0
    %v165 = vadd.f32 0.0, %v164
    %v166 = vpop.f32.mrf.mxu0
    %v167 = vpop.f32.mrf.mxu0
    %168 = vdwg.mxu0
    %v169 = vrot.slane %v79, 7
    %v170 = vsel %vm81, %v169, %v78
    %v171 = vpack.c.b16 %v170, %v170
    %v180 = vunpack.c.l.b16 %v55
    %v181 = vunpack.c.h.b16 %v55
    %v182 = vunpack.c.l.b16 %v56
    %v183 = vunpack.c.h.b16 %v56
    %v184 = vunpack.c.l.b16 %v57
    %v185 = vunpack.c.h.b16 %v57
    %v186 = vunpack.c.l.b16 %v58
    %v187 = vunpack.c.h.b16 %v58
    %v188 = vunpack.c.l.b16 %v59
    %v189 = vunpack.c.h.b16 %v59
    %v190 = vunpack.c.l.b16 %v60
    %v191 = vunpack.c.h.b16 %v60
    %v192 = vunpack.c.l.b16 %v61
    %v193 = vunpack.c.h.b16 %v61
    %v194 = vunpack.c.l.b16 %v62
    %v195 = vunpack.c.h.b16 %v62
    %v196 = vpack.c.b16 %v182, %v180
    %v197 = vpack.c.b16 %v183, %v181
    %v198 = vpack.c.b16 %v186, %v184
    %v199 = vpack.c.b16 %v187, %v185
    %v200 = vpack.c.b16 %v190, %v188
    %v201 = vpack.c.b16 %v191, %v189
    %v202 = vpack.c.b16 %v194, %v192
    %v203 = vpack.c.b16 %v195, %v193
    %v213 = vsel %vm124, %v171, 0
    %215 = vmatprep.subr.bf16.mxu0 0
    %216 = vmatpush1.bf16.msra.mxu0 0
    %217 = vmatprep.subr.bf16.mxu0 0
    %218 = vmatpush1.bf16.msra.mxu0 0
    %219 = vmatprep.subr.bf16.mxu0 0
    %220 = vmatpush1.bf16.msra.mxu0 0
    %221 = vmatprep.subr.bf16.mxu0 0
    %222 = vmatpush1.bf16.msra.mxu0 0
    %223 = vmatprep.subr.bf16.mxu0 %v203
    %224 = vmatpush1.bf16.msra.mxu0 %v202
    %225 = vmatprep.subr.bf16.mxu0 %v201
    %226 = vmatpush1.bf16.msra.mxu0 %v200
    %227 = vmatprep.subr.bf16.mxu0 %v199
    %228 = vmatpush1.bf16.msra.mxu0 %v198
    %229 = vmatprep.subr.bf16.mxu0 %v197
    %230 = vmatpush1.bf16.msra.mxu0 %v196
    %231 = vmatprep.subr.bf16.mxu0 0
    %232 = vmatpush2.bf16.msra.mxu0 0
    %233 = vmatprep.subr.bf16.mxu0 0
    %234 = vmatpush2.bf16.msra.mxu0 0
    %235 = vmatprep.subr.bf16.mxu0 0
    %236 = vmatpush2.bf16.msra.mxu0 0
    %237 = vmatprep.subr.bf16.mxu0 0
    %238 = vmatpush2.bf16.msra.mxu0 0
    %239 = vmatprep.subr.bf16.mxu0 0
    %240 = vmatpush2.bf16.msra.mxu0 0
    %241 = vmatprep.subr.bf16.mxu0 0
    %242 = vmatpush2.bf16.msra.mxu0 0
    %243 = vmatprep.subr.bf16.mxu0 0
    %244 = vmatpush2.bf16.msra.mxu0 0
    %245 = vmatprep.subr.bf16.mxu0 0
    %246 = vmatpush2.bf16.msra.mxu0 0
    %247 = vmatprep.mubr.bf16.mxu0 0
    %248 = vmatmul.mubr.bf16.gmra.mxu0 %v213
    %v249 = vpop.f32.mrf.mxu0
    %v250 = vadd.f32 %v163, %v249
    %v251 = vpop.f32.mrf.mxu0
    %v252 = vadd.f32 %v165, %v251
    %v253 = vpop.f32.mrf.mxu0
    %v254 = vpop.f32.mrf.mxu0
    %255 = vdwg.mxu0
    %v256 = vld [vmem:[%s0] sm:$0x2]
    %v257 = vld [vmem:[%s0 + $0x4] sm:$0x2]
    %s258 = scalar_lea.vmem [#allocation2], 128
    %v259 = vld [vmem:[%s258] sm:$0xff]
    %v260 = vld [vmem:[%s258 + $0x8] sm:$0xff]
    %v261 = vld [vmem:[%s258 + $0x10] sm:$0xff]
    %v262 = vld [vmem:[%s258 + $0x18] sm:$0xff]
    %v263 = vld [vmem:[%s258 + $0x20] sm:$0xff]
    %v264 = vld [vmem:[%s258 + $0x28] sm:$0xff]
    %v265 = vld [vmem:[%s258 + $0x30] sm:$0xff]
    %v266 = vld [vmem:[%s258 + $0x38] sm:$0xff]
    %v269 = vunpack.c.l.b16 %v256
    %v270 = vunpack.c.l.b16 %v257
    %v271 = vpack.c.b16 %v269, %v269
    %v272 = vpack.c.b16 %v270, %v270
    %v273 = vunpack.c.l.b16 %v271
    %v274 = vunpack.c.l.b16 %v272
    %v275 = vrot.slane %v273, 2
    %v276 = vrot.slane %v274, 1
    %v277 = vsel %vm81, %v276, %v275
    %v278 = vpack.c.b16 %v277, %v277
    %v287 = vunpack.c.l.b16 %v259
    %v288 = vunpack.c.h.b16 %v259
    %v289 = vunpack.c.l.b16 %v260
    %v290 = vunpack.c.h.b16 %v260
    %v291 = vunpack.c.l.b16 %v261
    %v292 = vunpack.c.h.b16 %v261
    %v293 = vunpack.c.l.b16 %v262
    %v294 = vunpack.c.h.b16 %v262
    %v295 = vunpack.c.l.b16 %v263
    %v296 = vunpack.c.h.b16 %v263
    %v297 = vunpack.c.l.b16 %v264
    %v298 = vunpack.c.h.b16 %v264
    %v299 = vunpack.c.l.b16 %v265
    %v300 = vunpack.c.h.b16 %v265
    %v301 = vunpack.c.l.b16 %v266
    %v302 = vunpack.c.h.b16 %v266
    %v303 = vpack.c.b16 %v289, %v287
    %v304 = vpack.c.b16 %v290, %v288
    %v305 = vpack.c.b16 %v293, %v291
    %v306 = vpack.c.b16 %v294, %v292
    %v307 = vpack.c.b16 %v297, %v295
    %v308 = vpack.c.b16 %v298, %v296
    %v309 = vpack.c.b16 %v301, %v299
    %v310 = vpack.c.b16 %v302, %v300
    %v320 = vsel %vm124, %v278, 0
    %322 = vmatprep.subr.bf16.mxu0 0
    %323 = vmatpush1.bf16.msra.mxu0 0
    %324 = vmatprep.subr.bf16.mxu0 0
    %325 = vmatpush1.bf16.msra.mxu0 0
    %326 = vmatprep.subr.bf16.mxu0 0
    %327 = vmatpush1.bf16.msra.mxu0 0
    %328 = vmatprep.subr.bf16.mxu0 0
    %329 = vmatpush1.bf16.msra.mxu0 0
    %330 = vmatprep.subr.bf16.mxu0 %v310
    %331 = vmatpush1.bf16.msra.mxu0 %v309
    %332 = vmatprep.subr.bf16.mxu0 %v308
    %333 = vmatpush1.bf16.msra.mxu0 %v307
    %334 = vmatprep.subr.bf16.mxu0 %v306
    %335 = vmatpush1.bf16.msra.mxu0 %v305
    %336 = vmatprep.subr.bf16.mxu0 %v304
    %337 = vmatpush1.bf16.msra.mxu0 %v303
    %338 = vmatprep.subr.bf16.mxu0 0
    %339 = vmatpush2.bf16.msra.mxu0 0
    %340 = vmatprep.subr.bf16.mxu0 0
    %341 = vmatpush2.bf16.msra.mxu0 0
    %342 = vmatprep.subr.bf16.mxu0 0
    %343 = vmatpush2.bf16.msra.mxu0 0
    %344 = vmatprep.subr.bf16.mxu0 0
    %345 = vmatpush2.bf16.msra.mxu0 0
    %346 = vmatprep.subr.bf16.mxu0 0
    %347 = vmatpush2.bf16.msra.mxu0 0
    %348 = vmatprep.subr.bf16.mxu0 0
    %349 = vmatpush2.bf16.msra.mxu0 0
    %350 = vmatprep.subr.bf16.mxu0 0
    %351 = vmatpush2.bf16.msra.mxu0 0
    %352 = vmatprep.subr.bf16.mxu0 0
    %353 = vmatpush2.bf16.msra.mxu0 0
    %354 = vmatprep.mubr.bf16.mxu0 0
    %355 = vmatmul.mubr.bf16.gmra.mxu0 %v320
    %v356 = vpop.f32.mrf.mxu0
    %v357 = vadd.f32 0.0, %v356
    %v358 = vpop.f32.mrf.mxu0
    %v359 = vadd.f32 0.0, %v358
    %v360 = vpop.f32.mrf.mxu0
    %v361 = vpop.f32.mrf.mxu0
    %362 = vdwg.mxu0
    %v363 = vadd.f32 %v250, %v357
    %v364 = vadd.f32 %v252, %v359
    %s365 = scalar_lea.vmem [#allocation2], 192
    %v366 = vld [vmem:[%s365] sm:$0xff]
    %v367 = vld [vmem:[%s365 + $0x8] sm:$0xff]
    %v368 = vld [vmem:[%s365 + $0x10] sm:$0xff]
    %v369 = vld [vmem:[%s365 + $0x18] sm:$0xff]
    %v370 = vld [vmem:[%s365 + $0x20] sm:$0xff]
    %v371 = vld [vmem:[%s365 + $0x28] sm:$0xff]
    %v372 = vld [vmem:[%s365 + $0x30] sm:$0xff]
    %v373 = vld [vmem:[%s365 + $0x38] sm:$0xff]
    %v374 = vrot.slane %v273, 3
    %v375 = vrot.slane %v274, 2
    %v376 = vsel %vm81, %v375, %v374
    %v377 = vpack.c.b16 %v376, %v376
    %v386 = vunpack.c.l.b16 %v366
    %v387 = vunpack.c.h.b16 %v366
    %v388 = vunpack.c.l.b16 %v367
    %v389 = vunpack.c.h.b16 %v367
    %v390 = vunpack.c.l.b16 %v368
    %v391 = vunpack.c.h.b16 %v368
    %v392 = vunpack.c.l.b16 %v369
    %v393 = vunpack.c.h.b16 %v369
    %v394 = vunpack.c.l.b16 %v370
    %v395 = vunpack.c.h.b16 %v370
    %v396 = vunpack.c.l.b16 %v371
    %v397 = vunpack.c.h.b16 %v371
    %v398 = vunpack.c.l.b16 %v372
    %v399 = vunpack.c.h.b16 %v372
    %v400 = vunpack.c.l.b16 %v373
    %v401 = vunpack.c.h.b16 %v373
    %v402 = vpack.c.b16 %v388, %v386
    %v403 = vpack.c.b16 %v389, %v387
    %v404 = vpack.c.b16 %v392, %v390
    %v405 = vpack.c.b16 %v393, %v391
    %v406 = vpack.c.b16 %v396, %v394
    %v407 = vpack.c.b16 %v397, %v395
    %v408 = vpack.c.b16 %v400, %v398
    %v409 = vpack.c.b16 %v401, %v399
    %v419 = vsel %vm124, %v377, 0
    %421 = vmatprep.subr.bf16.mxu0 0
    %422 = vmatpush1.bf16.msra.mxu0 0
    %423 = vmatprep.subr.bf16.mxu0 0
    %424 = vmatpush1.bf16.msra.mxu0 0
    %425 = vmatprep.subr.bf16.mxu0 0
    %426 = vmatpush1.bf16.msra.mxu0 0
    %427 = vmatprep.subr.bf16.mxu0 0
    %428 = vmatpush1.bf16.msra.mxu0 0
    %429 = vmatprep.subr.bf16.mxu0 %v409
    %430 = vmatpush1.bf16.msra.mxu0 %v408
    %431 = vmatprep.subr.bf16.mxu0 %v407
    %432 = vmatpush1.bf16.msra.mxu0 %v406
    %433 = vmatprep.subr.bf16.mxu0 %v405
    %434 = vmatpush1.bf16.msra.mxu0 %v404
    %435 = vmatprep.subr.bf16.mxu0 %v403
    %436 = vmatpush1.bf16.msra.mxu0 %v402
    %437 = vmatprep.subr.bf16.mxu0 0
    %438 = vmatpush2.bf16.msra.mxu0 0
    %439 = vmatprep.subr.bf16.mxu0 0
    %440 = vmatpush2.bf16.msra.mxu0 0
    %441 = vmatprep.subr.bf16.mxu0 0
    %442 = vmatpush2.bf16.msra.mxu0 0
    %443 = vmatprep.subr.bf16.mxu0 0
    %444 = vmatpush2.bf16.msra.mxu0 0
    %445 = vmatprep.subr.bf16.mxu0 0
    %446 = vmatpush2.bf16.msra.mxu0 0
    %447 = vmatprep.subr.bf16.mxu0 0
    %448 = vmatpush2.bf16.msra.mxu0 0
    %449 = vmatprep.subr.bf16.mxu0 0
    %450 = vmatpush2.bf16.msra.mxu0 0
    %451 = vmatprep.subr.bf16.mxu0 0
    %452 = vmatpush2.bf16.msra.mxu0 0
    %453 = vmatprep.mubr.bf16.mxu0 0
    %454 = vmatmul.mubr.bf16.gmra.mxu0 %v419
    %v455 = vpop.f32.mrf.mxu0
    %v456 = vadd.f32 0.0, %v455
    %v457 = vpop.f32.mrf.mxu0
    %v458 = vadd.f32 0.0, %v457
    %v459 = vpop.f32.mrf.mxu0
    %v460 = vpop.f32.mrf.mxu0
    %461 = vdwg.mxu0
    %v462 = vadd.f32 %v363, %v456
    %v463 = vadd.f32 %v364, %v458
    %v464 = vld [vmem:[%s0] sm:$0x4]
    %v465 = vld [vmem:[%s0 + $0x4] sm:$0x4]
    %s466 = scalar_lea.vmem [#allocation2], 256
    %v467 = vld [vmem:[%s466] sm:$0xff]
    %v468 = vld [vmem:[%s466 + $0x8] sm:$0xff]
    %v469 = vld [vmem:[%s466 + $0x10] sm:$0xff]
    %v470 = vld [vmem:[%s466 + $0x18] sm:$0xff]
    %v471 = vld [vmem:[%s466 + $0x20] sm:$0xff]
    %v472 = vld [vmem:[%s466 + $0x28] sm:$0xff]
    %v473 = vld [vmem:[%s466 + $0x30] sm:$0xff]
    %v474 = vld [vmem:[%s466 + $0x38] sm:$0xff]
    %v477 = vunpack.c.l.b16 %v464
    %v478 = vunpack.c.l.b16 %v465
    %v479 = vpack.c.b16 %v477, %v477
    %v480 = vpack.c.b16 %v478, %v478
    %v481 = vunpack.c.l.b16 %v479
    %v482 = vunpack.c.l.b16 %v480
    %v483 = vrot.slane %v481, 4
    %v484 = vrot.slane %v482, 3
    %v485 = vsel %vm81, %v484, %v483
    %v486 = vpack.c.b16 %v485, %v485
    %v495 = vunpack.c.l.b16 %v467
    %v496 = vunpack.c.h.b16 %v467
    %v497 = vunpack.c.l.b16 %v468
    %v498 = vunpack.c.h.b16 %v468
    %v499 = vunpack.c.l.b16 %v469
    %v500 = vunpack.c.h.b16 %v469
    %v501 = vunpack.c.l.b16 %v470
    %v502 = vunpack.c.h.b16 %v470
    %v503 = vunpack.c.l.b16 %v471
    %v504 = vunpack.c.h.b16 %v471
    %v505 = vunpack.c.l.b16 %v472
    %v506 = vunpack.c.h.b16 %v472
    %v507 = vunpack.c.l.b16 %v473
    %v508 = vunpack.c.h.b16 %v473
    %v509 = vunpack.c.l.b16 %v474
    %v510 = vunpack.c.h.b16 %v474
    %v511 = vpack.c.b16 %v497, %v495
    %v512 = vpack.c.b16 %v498, %v496
    %v513 = vpack.c.b16 %v501, %v499
    %v514 = vpack.c.b16 %v502, %v500
    %v515 = vpack.c.b16 %v505, %v503
    %v516 = vpack.c.b16 %v506, %v504
    %v517 = vpack.c.b16 %v509, %v507
    %v518 = vpack.c.b16 %v510, %v508
    %v528 = vsel %vm124, %v486, 0
    %530 = vmatprep.subr.bf16.mxu0 0
    %531 = vmatpush1.bf16.msra.mxu0 0
    %532 = vmatprep.subr.bf16.mxu0 0
    %533 = vmatpush1.bf16.msra.mxu0 0
    %534 = vmatprep.subr.bf16.mxu0 0
    %535 = vmatpush1.bf16.msra.mxu0 0
    %536 = vmatprep.subr.bf16.mxu0 0
    %537 = vmatpush1.bf16.msra.mxu0 0
    %538 = vmatprep.subr.bf16.mxu0 %v518
    %539 = vmatpush1.bf16.msra.mxu0 %v517
    %540 = vmatprep.subr.bf16.mxu0 %v516
    %541 = vmatpush1.bf16.msra.mxu0 %v515
    %542 = vmatprep.subr.bf16.mxu0 %v514
    %543 = vmatpush1.bf16.msra.mxu0 %v513
    %544 = vmatprep.subr.bf16.mxu0 %v512
    %545 = vmatpush1.bf16.msra.mxu0 %v511
    %546 = vmatprep.subr.bf16.mxu0 0
    %547 = vmatpush2.bf16.msra.mxu0 0
    %548 = vmatprep.subr.bf16.mxu0 0
    %549 = vmatpush2.bf16.msra.mxu0 0
    %550 = vmatprep.subr.bf16.mxu0 0
    %551 = vmatpush2.bf16.msra.mxu0 0
    %552 = vmatprep.subr.bf16.mxu0 0
    %553 = vmatpush2.bf16.msra.mxu0 0
    %554 = vmatprep.subr.bf16.mxu0 0
    %555 = vmatpush2.bf16.msra.mxu0 0
    %556 = vmatprep.subr.bf16.mxu0 0
    %557 = vmatpush2.bf16.msra.mxu0 0
    %558 = vmatprep.subr.bf16.mxu0 0
    %559 = vmatpush2.bf16.msra.mxu0 0
    %560 = vmatprep.subr.bf16.mxu0 0
    %561 = vmatpush2.bf16.msra.mxu0 0
    %562 = vmatprep.mubr.bf16.mxu0 0
    %563 = vmatmul.mubr.bf16.gmra.mxu0 %v528
    %v564 = vpop.f32.mrf.mxu0
    %v565 = vadd.f32 0.0, %v564
    %v566 = vpop.f32.mrf.mxu0
    %v567 = vadd.f32 0.0, %v566
    %v568 = vpop.f32.mrf.mxu0
    %v569 = vpop.f32.mrf.mxu0
    %570 = vdwg.mxu0
    %v571 = vadd.f32 %v462, %v565
    %v572 = vadd.f32 %v463, %v567
    %s573 = scalar_lea.vmem [#allocation2], 320
    %v574 = vld [vmem:[%s573] sm:$0xff]
    %v575 = vld [vmem:[%s573 + $0x8] sm:$0xff]
    %v576 = vld [vmem:[%s573 + $0x10] sm:$0xff]
    %v577 = vld [vmem:[%s573 + $0x18] sm:$0xff]
    %v578 = vld [vmem:[%s573 + $0x20] sm:$0xff]
    %v579 = vld [vmem:[%s573 + $0x28] sm:$0xff]
    %v580 = vld [vmem:[%s573 + $0x30] sm:$0xff]
    %v581 = vld [vmem:[%s573 + $0x38] sm:$0xff]
    %v582 = vrot.slane %v481, 5
    %v583 = vrot.slane %v482, 4
    %v584 = vsel %vm81, %v583, %v582
    %v585 = vpack.c.b16 %v584, %v584
    %v594 = vunpack.c.l.b16 %v574
    %v595 = vunpack.c.h.b16 %v574
    %v596 = vunpack.c.l.b16 %v575
    %v597 = vunpack.c.h.b16 %v575
    %v598 = vunpack.c.l.b16 %v576
    %v599 = vunpack.c.h.b16 %v576
    %v600 = vunpack.c.l.b16 %v577
    %v601 = vunpack.c.h.b16 %v577
    %v602 = vunpack.c.l.b16 %v578
    %v603 = vunpack.c.h.b16 %v578
    %v604 = vunpack.c.l.b16 %v579
    %v605 = vunpack.c.h.b16 %v579
    %v606 = vunpack.c.l.b16 %v580
    %v607 = vunpack.c.h.b16 %v580
    %v608 = vunpack.c.l.b16 %v581
    %v609 = vunpack.c.h.b16 %v581
    %v610 = vpack.c.b16 %v596, %v594
    %v611 = vpack.c.b16 %v597, %v595
    %v612 = vpack.c.b16 %v600, %v598
    %v613 = vpack.c.b16 %v601, %v599
    %v614 = vpack.c.b16 %v604, %v602
    %v615 = vpack.c.b16 %v605, %v603
    %v616 = vpack.c.b16 %v608, %v606
    %v617 = vpack.c.b16 %v609, %v607
    %v627 = vsel %vm124, %v585, 0
    %629 = vmatprep.subr.bf16.mxu0 0
    %630 = vmatpush1.bf16.msra.mxu0 0
    %631 = vmatprep.subr.bf16.mxu0 0
    %632 = vmatpush1.bf16.msra.mxu0 0
    %633 = vmatprep.subr.bf16.mxu0 0
    %634 = vmatpush1.bf16.msra.mxu0 0
    %635 = vmatprep.subr.bf16.mxu0 0
    %636 = vmatpush1.bf16.msra.mxu0 0
    %637 = vmatprep.subr.bf16.mxu0 %v617
    %638 = vmatpush1.bf16.msra.mxu0 %v616
    %639 = vmatprep.subr.bf16.mxu0 %v615
    %640 = vmatpush1.bf16.msra.mxu0 %v614
    %641 = vmatprep.subr.bf16.mxu0 %v613
    %642 = vmatpush1.bf16.msra.mxu0 %v612
    %643 = vmatprep.subr.bf16.mxu0 %v611
    %644 = vmatpush1.bf16.msra.mxu0 %v610
    %645 = vmatprep.subr.bf16.mxu0 0
    %646 = vmatpush2.bf16.msra.mxu0 0
    %647 = vmatprep.subr.bf16.mxu0 0
    %648 = vmatpush2.bf16.msra.mxu0 0
    %649 = vmatprep.subr.bf16.mxu0 0
    %650 = vmatpush2.bf16.msra.mxu0 0
    %651 = vmatprep.subr.bf16.mxu0 0
    %652 = vmatpush2.bf16.msra.mxu0 0
    %653 = vmatprep.subr.bf16.mxu0 0
    %654 = vmatpush2.bf16.msra.mxu0 0
    %655 = vmatprep.subr.bf16.mxu0 0
    %656 = vmatpush2.bf16.msra.mxu0 0
    %657 = vmatprep.subr.bf16.mxu0 0
    %658 = vmatpush2.bf16.msra.mxu0 0
    %659 = vmatprep.subr.bf16.mxu0 0
    %660 = vmatpush2.bf16.msra.mxu0 0
    %661 = vmatprep.mubr.bf16.mxu0 0
    %662 = vmatmul.mubr.bf16.gmra.mxu0 %v627
    %v663 = vpop.f32.mrf.mxu0
    %v664 = vadd.f32 0.0, %v663
    %v665 = vpop.f32.mrf.mxu0
    %v666 = vadd.f32 0.0, %v665
    %v667 = vpop.f32.mrf.mxu0
    %v668 = vpop.f32.mrf.mxu0
    %669 = vdwg.mxu0
    %v670 = vadd.f32 %v571, %v664
    %v671 = vadd.f32 %v572, %v666
    %v672 = vld [vmem:[%s0] sm:$0x8]
    %v673 = vld [vmem:[%s0 + $0x4] sm:$0x8]
    %s674 = scalar_lea.vmem [#allocation2], 384
    %v675 = vld [vmem:[%s674] sm:$0xff]
    %v676 = vld [vmem:[%s674 + $0x8] sm:$0xff]
    %v677 = vld [vmem:[%s674 + $0x10] sm:$0xff]
    %v678 = vld [vmem:[%s674 + $0x18] sm:$0xff]
    %v679 = vld [vmem:[%s674 + $0x20] sm:$0xff]
    %v680 = vld [vmem:[%s674 + $0x28] sm:$0xff]
    %v681 = vld [vmem:[%s674 + $0x30] sm:$0xff]
    %v682 = vld [vmem:[%s674 + $0x38] sm:$0xff]
    %v685 = vunpack.c.l.b16 %v672
    %v686 = vunpack.c.l.b16 %v673
    %v687 = vpack.c.b16 %v685, %v685
    %v688 = vpack.c.b16 %v686, %v686
    %v689 = vunpack.c.l.b16 %v687
    %v690 = vunpack.c.l.b16 %v688
    %v691 = vrot.slane %v689, 6
    %v692 = vrot.slane %v690, 5
    %v693 = vsel %vm81, %v692, %v691
    %v694 = vpack.c.b16 %v693, %v693
    %v703 = vunpack.c.l.b16 %v675
    %v704 = vunpack.c.h.b16 %v675
    %v705 = vunpack.c.l.b16 %v676
    %v706 = vunpack.c.h.b16 %v676
    %v707 = vunpack.c.l.b16 %v677
    %v708 = vunpack.c.h.b16 %v677
    %v709 = vunpack.c.l.b16 %v678
    %v710 = vunpack.c.h.b16 %v678
    %v711 = vunpack.c.l.b16 %v679
    %v712 = vunpack.c.h.b16 %v679
    %v713 = vunpack.c.l.b16 %v680
    %v714 = vunpack.c.h.b16 %v680
    %v715 = vunpack.c.l.b16 %v681
    %v716 = vunpack.c.h.b16 %v681
    %v717 = vunpack.c.l.b16 %v682
    %v718 = vunpack.c.h.b16 %v682
    %v719 = vpack.c.b16 %v705, %v703
    %v720 = vpack.c.b16 %v706, %v704
    %v721 = vpack.c.b16 %v709, %v707
    %v722 = vpack.c.b16 %v710, %v708
    %v723 = vpack.c.b16 %v713, %v711
    %v724 = vpack.c.b16 %v714, %v712
    %v725 = vpack.c.b16 %v717, %v715
    %v726 = vpack.c.b16 %v718, %v716
    %v736 = vsel %vm124, %v694, 0
    %738 = vmatprep.subr.bf16.mxu0 0
    %739 = vmatpush1.bf16.msra.mxu0 0
    %740 = vmatprep.subr.bf16.mxu0 0
    %741 = vmatpush1.bf16.msra.mxu0 0
    %742 = vmatprep.subr.bf16.mxu0 0
    %743 = vmatpush1.bf16.msra.mxu0 0
    %744 = vmatprep.subr.bf16.mxu0 0
    %745 = vmatpush1.bf16.msra.mxu0 0
    %746 = vmatprep.subr.bf16.mxu0 %v726
    %747 = vmatpush1.bf16.msra.mxu0 %v725
    %748 = vmatprep.subr.bf16.mxu0 %v724
    %749 = vmatpush1.bf16.msra.mxu0 %v723
    %750 = vmatprep.subr.bf16.mxu0 %v722
    %751 = vmatpush1.bf16.msra.mxu0 %v721
    %752 = vmatprep.subr.bf16.mxu0 %v720
    %753 = vmatpush1.bf16.msra.mxu0 %v719
    %754 = vmatprep.subr.bf16.mxu0 0
    %755 = vmatpush2.bf16.msra.mxu0 0
    %756 = vmatprep.subr.bf16.mxu0 0
    %757 = vmatpush2.bf16.msra.mxu0 0
    %758 = vmatprep.subr.bf16.mxu0 0
    %759 = vmatpush2.bf16.msra.mxu0 0
    %760 = vmatprep.subr.bf16.mxu0 0
    %761 = vmatpush2.bf16.msra.mxu0 0
    %762 = vmatprep.subr.bf16.mxu0 0
    %763 = vmatpush2.bf16.msra.mxu0 0
    %764 = vmatprep.subr.bf16.mxu0 0
    %765 = vmatpush2.bf16.msra.mxu0 0
    %766 = vmatprep.subr.bf16.mxu0 0
    %767 = vmatpush2.bf16.msra.mxu0 0
    %768 = vmatprep.subr.bf16.mxu0 0
    %769 = vmatpush2.bf16.msra.mxu0 0
    %770 = vmatprep.mubr.bf16.mxu0 0
    %771 = vmatmul.mubr.bf16.gmra.mxu0 %v736
    %v772 = vpop.f32.mrf.mxu0
    %v773 = vadd.f32 0.0, %v772
    %v774 = vpop.f32.mrf.mxu0
    %v775 = vadd.f32 0.0, %v774
    %v776 = vpop.f32.mrf.mxu0
    %v777 = vpop.f32.mrf.mxu0
    %778 = vdwg.mxu0
    %v779 = vadd.f32 %v670, %v773
    %v780 = vadd.f32 %v671, %v775
    %v782 = vlaneseq
    %v783 = vshrl.u32 %v782, 7
    %v784 = vsub.s32 0, %v783
    %v785 = vrot.slane %v51, %v784
    %v786 = vlaneseq
    %v787 = vshrl.u32 %v786, 7
    %v788 = vsub.s32 1, %v787
    %v789 = vrot.slane %v51, %v788
    %v792 = vadd.f32 %v779, %v785
    %v793 = vadd.f32 %v780, %v789
    %v794 = vmax.f32 %v792, 0.0
    %v795 = vmax.f32 %v793, 0.0
    %v796 = vpack.c.bf16 %v794, %v794
    %v798 = vlaneseq
    %v799 = vshrl.u32 %v798, 7
    %v800 = vsub.s32 0, %v799
    %v801 = vrot.slane %v52, %v800
    %v819 = vunpack.c.l.b16 %v35
    %v820 = vunpack.c.l.b16 %v36
    %v821 = vunpack.c.l.b16 %v37
    %v822 = vunpack.c.l.b16 %v38
    %v823 = vunpack.c.l.b16 %v39
    %v824 = vunpack.c.l.b16 %v40
    %v825 = vunpack.c.l.b16 %v41
    %v826 = vunpack.c.l.b16 %v42
    %v827 = vunpack.c.l.b16 %v43
    %v828 = vunpack.c.l.b16 %v44
    %v829 = vunpack.c.l.b16 %v45
    %v830 = vunpack.c.l.b16 %v46
    %v831 = vunpack.c.l.b16 %v47
    %v832 = vunpack.c.l.b16 %v48
    %v833 = vunpack.c.l.b16 %v49
    %v834 = vunpack.c.l.b16 %v50
    %v835 = vpack.c.b16 %v820, %v819
    %v836 = vpack.c.b16 %v822, %v821
    %v837 = vpack.c.b16 %v824, %v823
    %v838 = vpack.c.b16 %v826, %v825
    %v839 = vpack.c.b16 %v828, %v827
    %v840 = vpack.c.b16 %v830, %v829
    %v841 = vpack.c.b16 %v832, %v831
    %v842 = vpack.c.b16 %v834, %v833
    %851 = vmatprep.subr.bf16.mxu0 0
    %852 = vmatpush1.bf16.msra.mxu0 %v842
    %853 = vmatprep.subr.bf16.mxu0 0
    %854 = vmatpush1.bf16.msra.mxu0 %v841
    %855 = vmatprep.subr.bf16.mxu0 0
    %856 = vmatpush1.bf16.msra.mxu0 %v840
    %857 = vmatprep.subr.bf16.mxu0 0
    %858 = vmatpush1.bf16.msra.mxu0 %v839
    %859 = vmatprep.subr.bf16.mxu0 0
    %860 = vmatpush1.bf16.msra.mxu0 %v838
    %861 = vmatprep.subr.bf16.mxu0 0
    %862 = vmatpush1.bf16.msra.mxu0 %v837
    %863 = vmatprep.subr.bf16.mxu0 0
    %864 = vmatpush1.bf16.msra.mxu0 %v836
    %865 = vmatprep.subr.bf16.mxu0 0
    %866 = vmatpush1.bf16.msra.mxu0 %v835
    %867 = vmatprep.subr.bf16.mxu0 0
    %868 = vmatpush2.bf16.msra.mxu0 0
    %869 = vmatprep.subr.bf16.mxu0 0
    %870 = vmatpush2.bf16.msra.mxu0 0
    %871 = vmatprep.subr.bf16.mxu0 0
    %872 = vmatpush2.bf16.msra.mxu0 0
    %873 = vmatprep.subr.bf16.mxu0 0
    %874 = vmatpush2.bf16.msra.mxu0 0
    %875 = vmatprep.subr.bf16.mxu0 0
    %876 = vmatpush2.bf16.msra.mxu0 0
    %877 = vmatprep.subr.bf16.mxu0 0
    %878 = vmatpush2.bf16.msra.mxu0 0
    %879 = vmatprep.subr.bf16.mxu0 0
    %880 = vmatpush2.bf16.msra.mxu0 0
    %881 = vmatprep.subr.bf16.mxu0 0
    %882 = vmatpush2.bf16.msra.mxu0 0
    %883 = vmatprep.mubr.bf16.mxu0 0
    %884 = vmatmul.mubr.bf16.gmra.mxu0 %v796
    %v885 = vpop.f32.mrf.mxu0
    %v886 = vadd.f32 %v801, %v885
    %v887 = vpop.f32.mrf.mxu0
    %v888 = vpop.f32.mrf.mxu0
    %v889 = vpop.f32.mrf.mxu0
    %890 = vdwg.mxu0
    %v891 = vmax.f32 %v886, 0.0
    %892 = vst [vmem:[%s5] sm:$0x3] %v891
    %v893 = vpack.c.bf16 %v795, %v795
    %894 = vmatprep.subr.bf16.mxu0 0
    %895 = vmatpush1.bf16.msra.mxu0 %v842
    %896 = vmatprep.subr.bf16.mxu0 0
    %897 = vmatpush1.bf16.msra.mxu0 %v841
    %898 = vmatprep.subr.bf16.mxu0 0
    %899 = vmatpush1.bf16.msra.mxu0 %v840
    %900 = vmatprep.subr.bf16.mxu0 0
    %901 = vmatpush1.bf16.msra.mxu0 %v839
    %902 = vmatprep.subr.bf16.mxu0 0
    %903 = vmatpush1.bf16.msra.mxu0 %v838
    %904 = vmatprep.subr.bf16.mxu0 0
    %905 = vmatpush1.bf16.msra.mxu0 %v837
    %906 = vmatprep.subr.bf16.mxu0 0
    %907 = vmatpush1.bf16.msra.mxu0 %v836
    %908 = vmatprep.subr.bf16.mxu0 0
    %909 = vmatpush1.bf16.msra.mxu0 %v835
    %910 = vmatprep.subr.bf16.mxu0 0
    %911 = vmatpush2.bf16.msra.mxu0 0
    %912 = vmatprep.subr.bf16.mxu0 0
    %913 = vmatpush2.bf16.msra.mxu0 0
    %914 = vmatprep.subr.bf16.mxu0 0
    %915 = vmatpush2.bf16.msra.mxu0 0
    %916 = vmatprep.subr.bf16.mxu0 0
    %917 = vmatpush2.bf16.msra.mxu0 0
    %918 = vmatprep.subr.bf16.mxu0 0
    %919 = vmatpush2.bf16.msra.mxu0 0
    %920 = vmatprep.subr.bf16.mxu0 0
    %921 = vmatpush2.bf16.msra.mxu0 0
    %922 = vmatprep.subr.bf16.mxu0 0
    %923 = vmatpush2.bf16.msra.mxu0 0
    %924 = vmatprep.subr.bf16.mxu0 0
    %925 = vmatpush2.bf16.msra.mxu0 0
    %926 = vmatprep.mubr.bf16.mxu0 0
    %927 = vmatmul.mubr.bf16.gmra.mxu0 %v893
    %v928 = vpop.f32.mrf.mxu0
    %v929 = vadd.f32 %v801, %v928
    %v930 = vpop.f32.mrf.mxu0
    %v931 = vpop.f32.mrf.mxu0
    %v932 = vpop.f32.mrf.mxu0
    %933 = vdwg.mxu0
    %v934 = vmax.f32 %v929, 0.0
    %s935 = scalar_lea.vmem %s5, 2
    %936 = vst [vmem:[%s935] sm:$0x3] %v934
    %v937 = vld [vmem:[%s0] sm:$0x1]
    %v938 = vld [vmem:[%s0 + $0x4] sm:$0x1]
    %v939 = vld [vmem:[#allocation2] sm:$0xff]
    %v940 = vld [vmem:[#allocation2 + $0x8] sm:$0xff]
    %v941 = vld [vmem:[#allocation2 + $0x10] sm:$0xff]
    %v942 = vld [vmem:[#allocation2 + $0x18] sm:$0xff]
    %v943 = vld [vmem:[#allocation2 + $0x20] sm:$0xff]
    %v944 = vld [vmem:[#allocation2 + $0x28] sm:$0xff]
    %v945 = vld [vmem:[#allocation2 + $0x30] sm:$0xff]
    %v946 = vld [vmem:[#allocation2 + $0x38] sm:$0xff]
    %v947 = vld [vmem:[%s0] sm:$0x2]
    %v948 = vld [vmem:[%s0 + $0x4] sm:$0x2]
    %v949 = vld [vmem:[%s63] sm:$0xff]
    %v950 = vld [vmem:[%s63 + $0x8] sm:$0xff]
    %v951 = vld [vmem:[%s63 + $0x10] sm:$0xff]
    %v952 = vld [vmem:[%s63 + $0x18] sm:$0xff]
    %v953 = vld [vmem:[%s63 + $0x20] sm:$0xff]
    %v954 = vld [vmem:[%s63 + $0x28] sm:$0xff]
    %v955 = vld [vmem:[%s63 + $0x30] sm:$0xff]
    %v956 = vld [vmem:[%s63 + $0x38] sm:$0xff]
    %v959 = vunpack.c.l.b16 %v947
    %v960 = vunpack.c.l.b16 %v948
    %v961 = vpack.c.b16 %v959, %v959
    %v962 = vpack.c.b16 %v960, %v960
    %v963 = vunpack.c.l.b16 %v961
    %v964 = vunpack.c.l.b16 %v962
    %v965 = vrot.slane %v963, 2
    %v966 = vrot.slane %v964, 1
    %v967 = vsel %vm81, %v966, %v965
    %v968 = vpack.c.b16 %v967, %v967
    %v977 = vunpack.c.l.b16 %v949
    %v978 = vunpack.c.h.b16 %v949
    %v979 = vunpack.c.l.b16 %v950
    %v980 = vunpack.c.h.b16 %v950
    %v981 = vunpack.c.l.b16 %v951
    %v982 = vunpack.c.h.b16 %v951
    %v983 = vunpack.c.l.b16 %v952
    %v984 = vunpack.c.h.b16 %v952
    %v985 = vunpack.c.l.b16 %v953
    %v986 = vunpack.c.h.b16 %v953
    %v987 = vunpack.c.l.b16 %v954
    %v988 = vunpack.c.h.b16 %v954
    %v989 = vunpack.c.l.b16 %v955
    %v990 = vunpack.c.h.b16 %v955
    %v991 = vunpack.c.l.b16 %v956
    %v992 = vunpack.c.h.b16 %v956
    %v993 = vpack.c.b16 %v979, %v977
    %v994 = vpack.c.b16 %v980, %v978
    %v995 = vpack.c.b16 %v983, %v981
    %v996 = vpack.c.b16 %v984, %v982
    %v997 = vpack.c.b16 %v987, %v985
    %v998 = vpack.c.b16 %v988, %v986
    %v999 = vpack.c.b16 %v991, %v989
    %v1000 = vpack.c.b16 %v992, %v990
    %v1010 = vsel %vm124, %v968, 0
    %1012 = vmatprep.subr.bf16.mxu0 0
    %1013 = vmatpush1.bf16.msra.mxu0 0
    %1014 = vmatprep.subr.bf16.mxu0 0
    %1015 = vmatpush1.bf16.msra.mxu0 0
    %1016 = vmatprep.subr.bf16.mxu0 0
    %1017 = vmatpush1.bf16.msra.mxu0 0
    %1018 = vmatprep.subr.bf16.mxu0 0
    %1019 = vmatpush1.bf16.msra.mxu0 0
    %1020 = vmatprep.subr.bf16.mxu0 %v1000
    %1021 = vmatpush1.bf16.msra.mxu0 %v999
    %1022 = vmatprep.subr.bf16.mxu0 %v998
    %1023 = vmatpush1.bf16.msra.mxu0 %v997
    %1024 = vmatprep.subr.bf16.mxu0 %v996
    %1025 = vmatpush1.bf16.msra.mxu0 %v995
    %1026 = vmatprep.subr.bf16.mxu0 %v994
    %1027 = vmatpush1.bf16.msra.mxu0 %v993
    %1028 = vmatprep.subr.bf16.mxu0 0
    %1029 = vmatpush2.bf16.msra.mxu0 0
    %1030 = vmatprep.subr.bf16.mxu0 0
    %1031 = vmatpush2.bf16.msra.mxu0 0
    %1032 = vmatprep.subr.bf16.mxu0 0
    %1033 = vmatpush2.bf16.msra.mxu0 0
    %1034 = vmatprep.subr.bf16.mxu0 0
    %1035 = vmatpush2.bf16.msra.mxu0 0
    %1036 = vmatprep.subr.bf16.mxu0 0
    %1037 = vmatpush2.bf16.msra.mxu0 0
    %1038 = vmatprep.subr.bf16.mxu0 0
    %1039 = vmatpush2.bf16.msra.mxu0 0
    %1040 = vmatprep.subr.bf16.mxu0 0
    %1041 = vmatpush2.bf16.msra.mxu0 0
    %1042 = vmatprep.subr.bf16.mxu0 0
    %1043 = vmatpush2.bf16.msra.mxu0 0
    %1044 = vmatprep.mubr.bf16.mxu0 0
    %1045 = vmatmul.mubr.bf16.gmra.mxu0 %v1010
    %v1046 = vpop.f32.mrf.mxu0
    %v1047 = vadd.f32 0.0, %v1046
    %v1048 = vpop.f32.mrf.mxu0
    %v1049 = vadd.f32 0.0, %v1048
    %v1050 = vpop.f32.mrf.mxu0
    %v1051 = vpop.f32.mrf.mxu0
    %1052 = vdwg.mxu0
    %v1055 = vunpack.c.l.b16 %v937
    %v1056 = vunpack.c.l.b16 %v938
    %v1057 = vpack.c.b16 %v1055, %v1055
    %v1058 = vpack.c.b16 %v1056, %v1056
    %v1059 = vunpack.c.l.b16 %v1057
    %v1060 = vunpack.c.l.b16 %v1058
    %v1061 = vrot.slane %v1059, 1
    %v1062 = vsel %vm81, %v1060, %v1061
    %v1063 = vpack.c.b16 %v1062, %v1062
    %v1072 = vunpack.c.l.b16 %v939
    %v1073 = vunpack.c.h.b16 %v939
    %v1074 = vunpack.c.l.b16 %v940
    %v1075 = vunpack.c.h.b16 %v940
    %v1076 = vunpack.c.l.b16 %v941
    %v1077 = vunpack.c.h.b16 %v941
    %v1078 = vunpack.c.l.b16 %v942
    %v1079 = vunpack.c.h.b16 %v942
    %v1080 = vunpack.c.l.b16 %v943
    %v1081 = vunpack.c.h.b16 %v943
    %v1082 = vunpack.c.l.b16 %v944
    %v1083 = vunpack.c.h.b16 %v944
    %v1084 = vunpack.c.l.b16 %v945
    %v1085 = vunpack.c.h.b16 %v945
    %v1086 = vunpack.c.l.b16 %v946
    %v1087 = vunpack.c.h.b16 %v946
    %v1088 = vpack.c.b16 %v1074, %v1072
    %v1089 = vpack.c.b16 %v1075, %v1073
    %v1090 = vpack.c.b16 %v1078, %v1076
    %v1091 = vpack.c.b16 %v1079, %v1077
    %v1092 = vpack.c.b16 %v1082, %v1080
    %v1093 = vpack.c.b16 %v1083, %v1081
    %v1094 = vpack.c.b16 %v1086, %v1084
    %v1095 = vpack.c.b16 %v1087, %v1085
    %v1105 = vsel %vm124, %v1063, 0
    %1107 = vmatprep.subr.bf16.mxu0 0
    %1108 = vmatpush1.bf16.msra.mxu0 0
    %1109 = vmatprep.subr.bf16.mxu0 0
    %1110 = vmatpush1.bf16.msra.mxu0 0
    %1111 = vmatprep.subr.bf16.mxu0 0
    %1112 = vmatpush1.bf16.msra.mxu0 0
    %1113 = vmatprep.subr.bf16.mxu0 0
    %1114 = vmatpush1.bf16.msra.mxu0 0
    %1115 = vmatprep.subr.bf16.mxu0 %v1095
    %1116 = vmatpush1.bf16.msra.mxu0 %v1094
    %1117 = vmatprep.subr.bf16.mxu0 %v1093
    %1118 = vmatpush1.bf16.msra.mxu0 %v1092
    %1119 = vmatprep.subr.bf16.mxu0 %v1091
    %1120 = vmatpush1.bf16.msra.mxu0 %v1090
    %1121 = vmatprep.subr.bf16.mxu0 %v1089
    %1122 = vmatpush1.bf16.msra.mxu0 %v1088
    %1123 = vmatprep.subr.bf16.mxu0 0
    %1124 = vmatpush2.bf16.msra.mxu0 0
    %1125 = vmatprep.subr.bf16.mxu0 0
    %1126 = vmatpush2.bf16.msra.mxu0 0
    %1127 = vmatprep.subr.bf16.mxu0 0
    %1128 = vmatpush2.bf16.msra.mxu0 0
    %1129 = vmatprep.subr.bf16.mxu0 0
    %1130 = vmatpush2.bf16.msra.mxu0 0
    %1131 = vmatprep.subr.bf16.mxu0 0
    %1132 = vmatpush2.bf16.msra.mxu0 0
    %1133 = vmatprep.subr.bf16.mxu0 0
    %1134 = vmatpush2.bf16.msra.mxu0 0
    %1135 = vmatprep.subr.bf16.mxu0 0
    %1136 = vmatpush2.bf16.msra.mxu0 0
    %1137 = vmatprep.subr.bf16.mxu0 0
    %1138 = vmatpush2.bf16.msra.mxu0 0
    %1139 = vmatprep.mubr.bf16.mxu0 0
    %1140 = vmatmul.mubr.bf16.gmra.mxu0 %v1105
    %v1141 = vpop.f32.mrf.mxu0
    %v1142 = vadd.f32 %v1047, %v1141
    %v1143 = vpop.f32.mrf.mxu0
    %v1144 = vadd.f32 %v1049, %v1143
    %v1145 = vpop.f32.mrf.mxu0
    %v1146 = vpop.f32.mrf.mxu0
    %1147 = vdwg.mxu0
    %v1148 = vld [vmem:[%s258] sm:$0xff]
    %v1149 = vld [vmem:[%s258 + $0x8] sm:$0xff]
    %v1150 = vld [vmem:[%s258 + $0x10] sm:$0xff]
    %v1151 = vld [vmem:[%s258 + $0x18] sm:$0xff]
    %v1152 = vld [vmem:[%s258 + $0x20] sm:$0xff]
    %v1153 = vld [vmem:[%s258 + $0x28] sm:$0xff]
    %v1154 = vld [vmem:[%s258 + $0x30] sm:$0xff]
    %v1155 = vld [vmem:[%s258 + $0x38] sm:$0xff]
    %v1156 = vrot.slane %v963, 3
    %v1157 = vrot.slane %v964, 2
    %v1158 = vsel %vm81, %v1157, %v1156
    %v1159 = vpack.c.b16 %v1158, %v1158
    %v1168 = vunpack.c.l.b16 %v1148
    %v1169 = vunpack.c.h.b16 %v1148
    %v1170 = vunpack.c.l.b16 %v1149
    %v1171 = vunpack.c.h.b16 %v1149
    %v1172 = vunpack.c.l.b16 %v1150
    %v1173 = vunpack.c.h.b16 %v1150
    %v1174 = vunpack.c.l.b16 %v1151
    %v1175 = vunpack.c.h.b16 %v1151
    %v1176 = vunpack.c.l.b16 %v1152
    %v1177 = vunpack.c.h.b16 %v1152
    %v1178 = vunpack.c.l.b16 %v1153
    %v1179 = vunpack.c.h.b16 %v1153
    %v1180 = vunpack.c.l.b16 %v1154
    %v1181 = vunpack.c.h.b16 %v1154
    %v1182 = vunpack.c.l.b16 %v1155
    %v1183 = vunpack.c.h.b16 %v1155
    %v1184 = vpack.c.b16 %v1170, %v1168
    %v1185 = vpack.c.b16 %v1171, %v1169
    %v1186 = vpack.c.b16 %v1174, %v1172
    %v1187 = vpack.c.b16 %v1175, %v1173
    %v1188 = vpack.c.b16 %v1178, %v1176
    %v1189 = vpack.c.b16 %v1179, %v1177
    %v1190 = vpack.c.b16 %v1182, %v1180
    %v1191 = vpack.c.b16 %v1183, %v1181
    %v1201 = vsel %vm124, %v1159, 0
    %1203 = vmatprep.subr.bf16.mxu0 0
    %1204 = vmatpush1.bf16.msra.mxu0 0
    %1205 = vmatprep.subr.bf16.mxu0 0
    %1206 = vmatpush1.bf16.msra.mxu0 0
    %1207 = vmatprep.subr.bf16.mxu0 0
    %1208 = vmatpush1.bf16.msra.mxu0 0
    %1209 = vmatprep.subr.bf16.mxu0 0
    %1210 = vmatpush1.bf16.msra.mxu0 0
    %1211 = vmatprep.subr.bf16.mxu0 %v1191
    %1212 = vmatpush1.bf16.msra.mxu0 %v1190
    %1213 = vmatprep.subr.bf16.mxu0 %v1189
    %1214 = vmatpush1.bf16.msra.mxu0 %v1188
    %1215 = vmatprep.subr.bf16.mxu0 %v1187
    %1216 = vmatpush1.bf16.msra.mxu0 %v1186
    %1217 = vmatprep.subr.bf16.mxu0 %v1185
    %1218 = vmatpush1.bf16.msra.mxu0 %v1184
    %1219 = vmatprep.subr.bf16.mxu0 0
    %1220 = vmatpush2.bf16.msra.mxu0 0
    %1221 = vmatprep.subr.bf16.mxu0 0
    %1222 = vmatpush2.bf16.msra.mxu0 0
    %1223 = vmatprep.subr.bf16.mxu0 0
    %1224 = vmatpush2.bf16.msra.mxu0 0
    %1225 = vmatprep.subr.bf16.mxu0 0
    %1226 = vmatpush2.bf16.msra.mxu0 0
    %1227 = vmatprep.subr.bf16.mxu0 0
    %1228 = vmatpush2.bf16.msra.mxu0 0
    %1229 = vmatprep.subr.bf16.mxu0 0
    %1230 = vmatpush2.bf16.msra.mxu0 0
    %1231 = vmatprep.subr.bf16.mxu0 0
    %1232 = vmatpush2.bf16.msra.mxu0 0
    %1233 = vmatprep.subr.bf16.mxu0 0
    %1234 = vmatpush2.bf16.msra.mxu0 0
    %1235 = vmatprep.mubr.bf16.mxu0 0
    %1236 = vmatmul.mubr.bf16.gmra.mxu0 %v1201
    %v1237 = vpop.f32.mrf.mxu0
    %v1238 = vadd.f32 0.0, %v1237
    %v1239 = vpop.f32.mrf.mxu0
    %v1240 = vadd.f32 0.0, %v1239
    %v1241 = vpop.f32.mrf.mxu0
    %v1242 = vpop.f32.mrf.mxu0
    %1243 = vdwg.mxu0
    %v1244 = vadd.f32 %v1142, %v1238
    %v1245 = vadd.f32 %v1144, %v1240
    %v1246 = vld [vmem:[%s0] sm:$0x4]
    %v1247 = vld [vmem:[%s0 + $0x4] sm:$0x4]
    %v1248 = vld [vmem:[%s365] sm:$0xff]
    %v1249 = vld [vmem:[%s365 + $0x8] sm:$0xff]
    %v1250 = vld [vmem:[%s365 + $0x10] sm:$0xff]
    %v1251 = vld [vmem:[%s365 + $0x18] sm:$0xff]
    %v1252 = vld [vmem:[%s365 + $0x20] sm:$0xff]
    %v1253 = vld [vmem:[%s365 + $0x28] sm:$0xff]
    %v1254 = vld [vmem:[%s365 + $0x30] sm:$0xff]
    %v1255 = vld [vmem:[%s365 + $0x38] sm:$0xff]
    %v1258 = vunpack.c.l.b16 %v1246
    %v1259 = vunpack.c.l.b16 %v1247
    %v1260 = vpack.c.b16 %v1258, %v1258
    %v1261 = vpack.c.b16 %v1259, %v1259
    %v1262 = vunpack.c.l.b16 %v1260
    %v1263 = vunpack.c.l.b16 %v1261
    %v1264 = vrot.slane %v1262, 4
    %v1265 = vrot.slane %v1263, 3
    %v1266 = vsel %vm81, %v1265, %v1264
    %v1267 = vpack.c.b16 %v1266, %v1266
    %v1276 = vunpack.c.l.b16 %v1248
    %v1277 = vunpack.c.h.b16 %v1248
    %v1278 = vunpack.c.l.b16 %v1249
    %v1279 = vunpack.c.h.b16 %v1249
    %v1280 = vunpack.c.l.b16 %v1250
    %v1281 = vunpack.c.h.b16 %v1250
    %v1282 = vunpack.c.l.b16 %v1251
    %v1283 = vunpack.c.h.b16 %v1251
    %v1284 = vunpack.c.l.b16 %v1252
    %v1285 = vunpack.c.h.b16 %v1252
    %v1286 = vunpack.c.l.b16 %v1253
    %v1287 = vunpack.c.h.b16 %v1253
    %v1288 = vunpack.c.l.b16 %v1254
    %v1289 = vunpack.c.h.b16 %v1254
    %v1290 = vunpack.c.l.b16 %v1255
    %v1291 = vunpack.c.h.b16 %v1255
    %v1292 = vpack.c.b16 %v1278, %v1276
    %v1293 = vpack.c.b16 %v1279, %v1277
    %v1294 = vpack.c.b16 %v1282, %v1280
    %v1295 = vpack.c.b16 %v1283, %v1281
    %v1296 = vpack.c.b16 %v1286, %v1284
    %v1297 = vpack.c.b16 %v1287, %v1285
    %v1298 = vpack.c.b16 %v1290, %v1288
    %v1299 = vpack.c.b16 %v1291, %v1289
    %v1309 = vsel %vm124, %v1267, 0
    %1311 = vmatprep.subr.bf16.mxu0 0
    %1312 = vmatpush1.bf16.msra.mxu0 0
    %1313 = vmatprep.subr.bf16.mxu0 0
    %1314 = vmatpush1.bf16.msra.mxu0 0
    %1315 = vmatprep.subr.bf16.mxu0 0
    %1316 = vmatpush1.bf16.msra.mxu0 0
    %1317 = vmatprep.subr.bf16.mxu0 0
    %1318 = vmatpush1.bf16.msra.mxu0 0
    %1319 = vmatprep.subr.bf16.mxu0 %v1299
    %1320 = vmatpush1.bf16.msra.mxu0 %v1298
    %1321 = vmatprep.subr.bf16.mxu0 %v1297
    %1322 = vmatpush1.bf16.msra.mxu0 %v1296
    %1323 = vmatprep.subr.bf16.mxu0 %v1295
    %1324 = vmatpush1.bf16.msra.mxu0 %v1294
    %1325 = vmatprep.subr.bf16.mxu0 %v1293
    %1326 = vmatpush1.bf16.msra.mxu0 %v1292
    %1327 = vmatprep.subr.bf16.mxu0 0
    %1328 = vmatpush2.bf16.msra.mxu0 0
    %1329 = vmatprep.subr.bf16.mxu0 0
    %1330 = vmatpush2.bf16.msra.mxu0 0
    %1331 = vmatprep.subr.bf16.mxu0 0
    %1332 = vmatpush2.bf16.msra.mxu0 0
    %1333 = vmatprep.subr.bf16.mxu0 0
    %1334 = vmatpush2.bf16.msra.mxu0 0
    %1335 = vmatprep.subr.bf16.mxu0 0
    %1336 = vmatpush2.bf16.msra.mxu0 0
    %1337 = vmatprep.subr.bf16.mxu0 0
    %1338 = vmatpush2.bf16.msra.mxu0 0
    %1339 = vmatprep.subr.bf16.mxu0 0
    %1340 = vmatpush2.bf16.msra.mxu0 0
    %1341 = vmatprep.subr.bf16.mxu0 0
    %1342 = vmatpush2.bf16.msra.mxu0 0
    %1343 = vmatprep.mubr.bf16.mxu0 0
    %1344 = vmatmul.mubr.bf16.gmra.mxu0 %v1309
    %v1345 = vpop.f32.mrf.mxu0
    %v1346 = vadd.f32 0.0, %v1345
    %v1347 = vpop.f32.mrf.mxu0
    %v1348 = vadd.f32 0.0, %v1347
    %v1349 = vpop.f32.mrf.mxu0
    %v1350 = vpop.f32.mrf.mxu0
    %1351 = vdwg.mxu0
    %v1352 = vadd.f32 %v1244, %v1346
    %v1353 = vadd.f32 %v1245, %v1348
    %v1354 = vld [vmem:[%s466] sm:$0xff]
    %v1355 = vld [vmem:[%s466 + $0x8] sm:$0xff]
    %v1356 = vld [vmem:[%s466 + $0x10] sm:$0xff]
    %v1357 = vld [vmem:[%s466 + $0x18] sm:$0xff]
    %v1358 = vld [vmem:[%s466 + $0x20] sm:$0xff]
    %v1359 = vld [vmem:[%s466 + $0x28] sm:$0xff]
    %v1360 = vld [vmem:[%s466 + $0x30] sm:$0xff]
    %v1361 = vld [vmem:[%s466 + $0x38] sm:$0xff]
    %v1362 = vrot.slane %v1262, 5
    %v1363 = vrot.slane %v1263, 4
    %v1364 = vsel %vm81, %v1363, %v1362
    %v1365 = vpack.c.b16 %v1364, %v1364
    %v1374 = vunpack.c.l.b16 %v1354
    %v1375 = vunpack.c.h.b16 %v1354
    %v1376 = vunpack.c.l.b16 %v1355
    %v1377 = vunpack.c.h.b16 %v1355
    %v1378 = vunpack.c.l.b16 %v1356
    %v1379 = vunpack.c.h.b16 %v1356
    %v1380 = vunpack.c.l.b16 %v1357
    %v1381 = vunpack.c.h.b16 %v1357
    %v1382 = vunpack.c.l.b16 %v1358
    %v1383 = vunpack.c.h.b16 %v1358
    %v1384 = vunpack.c.l.b16 %v1359
    %v1385 = vunpack.c.h.b16 %v1359
    %v1386 = vunpack.c.l.b16 %v1360
    %v1387 = vunpack.c.h.b16 %v1360
    %v1388 = vunpack.c.l.b16 %v1361
    %v1389 = vunpack.c.h.b16 %v1361
    %v1390 = vpack.c.b16 %v1376, %v1374
    %v1391 = vpack.c.b16 %v1377, %v1375
    %v1392 = vpack.c.b16 %v1380, %v1378
    %v1393 = vpack.c.b16 %v1381, %v1379
    %v1394 = vpack.c.b16 %v1384, %v1382
    %v1395 = vpack.c.b16 %v1385, %v1383
    %v1396 = vpack.c.b16 %v1388, %v1386
    %v1397 = vpack.c.b16 %v1389, %v1387
    %v1407 = vsel %vm124, %v1365, 0
    %1409 = vmatprep.subr.bf16.mxu0 0
    %1410 = vmatpush1.bf16.msra.mxu0 0
    %1411 = vmatprep.subr.bf16.mxu0 0
    %1412 = vmatpush1.bf16.msra.mxu0 0
    %1413 = vmatprep.subr.bf16.mxu0 0
    %1414 = vmatpush1.bf16.msra.mxu0 0
    %1415 = vmatprep.subr.bf16.mxu0 0
    %1416 = vmatpush1.bf16.msra.mxu0 0
    %1417 = vmatprep.subr.bf16.mxu0 %v1397
    %1418 = vmatpush1.bf16.msra.mxu0 %v1396
    %1419 = vmatprep.subr.bf16.mxu0 %v1395
    %1420 = vmatpush1.bf16.msra.mxu0 %v1394
    %1421 = vmatprep.subr.bf16.mxu0 %v1393
    %1422 = vmatpush1.bf16.msra.mxu0 %v1392
    %1423 = vmatprep.subr.bf16.mxu0 %v1391
    %1424 = vmatpush1.bf16.msra.mxu0 %v1390
    %1425 = vmatprep.subr.bf16.mxu0 0
    %1426 = vmatpush2.bf16.msra.mxu0 0
    %1427 = vmatprep.subr.bf16.mxu0 0
    %1428 = vmatpush2.bf16.msra.mxu0 0
    %1429 = vmatprep.subr.bf16.mxu0 0
    %1430 = vmatpush2.bf16.msra.mxu0 0
    %1431 = vmatprep.subr.bf16.mxu0 0
    %1432 = vmatpush2.bf16.msra.mxu0 0
    %1433 = vmatprep.subr.bf16.mxu0 0
    %1434 = vmatpush2.bf16.msra.mxu0 0
    %1435 = vmatprep.subr.bf16.mxu0 0
    %1436 = vmatpush2.bf16.msra.mxu0 0
    %1437 = vmatprep.subr.bf16.mxu0 0
    %1438 = vmatpush2.bf16.msra.mxu0 0
    %1439 = vmatprep.subr.bf16.mxu0 0
    %1440 = vmatpush2.bf16.msra.mxu0 0
    %1441 = vmatprep.mubr.bf16.mxu0 0
    %1442 = vmatmul.mubr.bf16.gmra.mxu0 %v1407
    %v1443 = vpop.f32.mrf.mxu0
    %v1444 = vadd.f32 0.0, %v1443
    %v1445 = vpop.f32.mrf.mxu0
    %v1446 = vadd.f32 0.0, %v1445
    %v1447 = vpop.f32.mrf.mxu0
    %v1448 = vpop.f32.mrf.mxu0
    %1449 = vdwg.mxu0
    %v1450 = vadd.f32 %v1352, %v1444
    %v1451 = vadd.f32 %v1353, %v1446
    %v1452 = vld [vmem:[%s0] sm:$0x8]
    %v1453 = vld [vmem:[%s0 + $0x4] sm:$0x8]
    %v1454 = vld [vmem:[%s573] sm:$0xff]
    %v1455 = vld [vmem:[%s573 + $0x8] sm:$0xff]
    %v1456 = vld [vmem:[%s573 + $0x10] sm:$0xff]
    %v1457 = vld [vmem:[%s573 + $0x18] sm:$0xff]
    %v1458 = vld [vmem:[%s573 + $0x20] sm:$0xff]
    %v1459 = vld [vmem:[%s573 + $0x28] sm:$0xff]
    %v1460 = vld [vmem:[%s573 + $0x30] sm:$0xff]
    %v1461 = vld [vmem:[%s573 + $0x38] sm:$0xff]
    %v1464 = vunpack.c.l.b16 %v1452
    %v1465 = vunpack.c.l.b16 %v1453
    %v1466 = vpack.c.b16 %v1464, %v1464
    %v1467 = vpack.c.b16 %v1465, %v1465
    %v1468 = vunpack.c.l.b16 %v1466
    %v1469 = vunpack.c.l.b16 %v1467
    %v1470 = vrot.slane %v1468, 6
    %v1471 = vrot.slane %v1469, 5
    %v1472 = vsel %vm81, %v1471, %v1470
    %v1473 = vpack.c.b16 %v1472, %v1472
    %v1482 = vunpack.c.l.b16 %v1454
    %v1483 = vunpack.c.h.b16 %v1454
    %v1484 = vunpack.c.l.b16 %v1455
    %v1485 = vunpack.c.h.b16 %v1455
    %v1486 = vunpack.c.l.b16 %v1456
    %v1487 = vunpack.c.h.b16 %v1456
    %v1488 = vunpack.c.l.b16 %v1457
    %v1489 = vunpack.c.h.b16 %v1457
    %v1490 = vunpack.c.l.b16 %v1458
    %v1491 = vunpack.c.h.b16 %v1458
    %v1492 = vunpack.c.l.b16 %v1459
    %v1493 = vunpack.c.h.b16 %v1459
    %v1494 = vunpack.c.l.b16 %v1460
    %v1495 = vunpack.c.h.b16 %v1460
    %v1496 = vunpack.c.l.b16 %v1461
    %v1497 = vunpack.c.h.b16 %v1461
    %v1498 = vpack.c.b16 %v1484, %v1482
    %v1499 = vpack.c.b16 %v1485, %v1483
    %v1500 = vpack.c.b16 %v1488, %v1486
    %v1501 = vpack.c.b16 %v1489, %v1487
    %v1502 = vpack.c.b16 %v1492, %v1490
    %v1503 = vpack.c.b16 %v1493, %v1491
    %v1504 = vpack.c.b16 %v1496, %v1494
    %v1505 = vpack.c.b16 %v1497, %v1495
    %v1515 = vsel %vm124, %v1473, 0
    %1517 = vmatprep.subr.bf16.mxu0 0
    %1518 = vmatpush1.bf16.msra.mxu0 0
    %1519 = vmatprep.subr.bf16.mxu0 0
    %1520 = vmatpush1.bf16.msra.mxu0 0
    %1521 = vmatprep.subr.bf16.mxu0 0
    %1522 = vmatpush1.bf16.msra.mxu0 0
    %1523 = vmatprep.subr.bf16.mxu0 0
    %1524 = vmatpush1.bf16.msra.mxu0 0
    %1525 = vmatprep.subr.bf16.mxu0 %v1505
    %1526 = vmatpush1.bf16.msra.mxu0 %v1504
    %1527 = vmatprep.subr.bf16.mxu0 %v1503
    %1528 = vmatpush1.bf16.msra.mxu0 %v1502
    %1529 = vmatprep.subr.bf16.mxu0 %v1501
    %1530 = vmatpush1.bf16.msra.mxu0 %v1500
    %1531 = vmatprep.subr.bf16.mxu0 %v1499
    %1532 = vmatpush1.bf16.msra.mxu0 %v1498
    %1533 = vmatprep.subr.bf16.mxu0 0
    %1534 = vmatpush2.bf16.msra.mxu0 0
    %1535 = vmatprep.subr.bf16.mxu0 0
    %1536 = vmatpush2.bf16.msra.mxu0 0
    %1537 = vmatprep.subr.bf16.mxu0 0
    %1538 = vmatpush2.bf16.msra.mxu0 0
    %1539 = vmatprep.subr.bf16.mxu0 0
    %1540 = vmatpush2.bf16.msra.mxu0 0
    %1541 = vmatprep.subr.bf16.mxu0 0
    %1542 = vmatpush2.bf16.msra.mxu0 0
    %1543 = vmatprep.subr.bf16.mxu0 0
    %1544 = vmatpush2.bf16.msra.mxu0 0
    %1545 = vmatprep.subr.bf16.mxu0 0
    %1546 = vmatpush2.bf16.msra.mxu0 0
    %1547 = vmatprep.subr.bf16.mxu0 0
    %1548 = vmatpush2.bf16.msra.mxu0 0
    %1549 = vmatprep.mubr.bf16.mxu0 0
    %1550 = vmatmul.mubr.bf16.gmra.mxu0 %v1515
    %v1551 = vpop.f32.mrf.mxu0
    %v1552 = vadd.f32 0.0, %v1551
    %v1553 = vpop.f32.mrf.mxu0
    %v1554 = vadd.f32 0.0, %v1553
    %v1555 = vpop.f32.mrf.mxu0
    %v1556 = vpop.f32.mrf.mxu0
    %1557 = vdwg.mxu0
    %v1558 = vadd.f32 %v1450, %v1552
    %v1559 = vadd.f32 %v1451, %v1554
    %v1560 = vld [vmem:[%s674] sm:$0xff]
    %v1561 = vld [vmem:[%s674 + $0x8] sm:$0xff]
    %v1562 = vld [vmem:[%s674 + $0x10] sm:$0xff]
    %v1563 = vld [vmem:[%s674 + $0x18] sm:$0xff]
    %v1564 = vld [vmem:[%s674 + $0x20] sm:$0xff]
    %v1565 = vld [vmem:[%s674 + $0x28] sm:$0xff]
    %v1566 = vld [vmem:[%s674 + $0x30] sm:$0xff]
    %v1567 = vld [vmem:[%s674 + $0x38] sm:$0xff]
    %v1568 = vrot.slane %v1468, 7
    %v1569 = vrot.slane %v1469, 6
    %v1570 = vsel %vm81, %v1569, %v1568
    %v1571 = vpack.c.b16 %v1570, %v1570
    %v1580 = vunpack.c.l.b16 %v1560
    %v1581 = vunpack.c.h.b16 %v1560
    %v1582 = vunpack.c.l.b16 %v1561
    %v1583 = vunpack.c.h.b16 %v1561
    %v1584 = vunpack.c.l.b16 %v1562
    %v1585 = vunpack.c.h.b16 %v1562
    %v1586 = vunpack.c.l.b16 %v1563
    %v1587 = vunpack.c.h.b16 %v1563
    %v1588 = vunpack.c.l.b16 %v1564
    %v1589 = vunpack.c.h.b16 %v1564
    %v1590 = vunpack.c.l.b16 %v1565
    %v1591 = vunpack.c.h.b16 %v1565
    %v1592 = vunpack.c.l.b16 %v1566
    %v1593 = vunpack.c.h.b16 %v1566
    %v1594 = vunpack.c.l.b16 %v1567
    %v1595 = vunpack.c.h.b16 %v1567
    %v1596 = vpack.c.b16 %v1582, %v1580
    %v1597 = vpack.c.b16 %v1583, %v1581
    %v1598 = vpack.c.b16 %v1586, %v1584
    %v1599 = vpack.c.b16 %v1587, %v1585
    %v1600 = vpack.c.b16 %v1590, %v1588
    %v1601 = vpack.c.b16 %v1591, %v1589
    %v1602 = vpack.c.b16 %v1594, %v1592
    %v1603 = vpack.c.b16 %v1595, %v1593
    %v1613 = vsel %vm124, %v1571, 0
    %1615 = vmatprep.subr.bf16.mxu0 0
    %1616 = vmatpush1.bf16.msra.mxu0 0
    %1617 = vmatprep.subr.bf16.mxu0 0
    %1618 = vmatpush1.bf16.msra.mxu0 0
    %1619 = vmatprep.subr.bf16.mxu0 0
    %1620 = vmatpush1.bf16.msra.mxu0 0
    %1621 = vmatprep.subr.bf16.mxu0 0
    %1622 = vmatpush1.bf16.msra.mxu0 0
    %1623 = vmatprep.subr.bf16.mxu0 %v1603
    %1624 = vmatpush1.bf16.msra.mxu0 %v1602
    %1625 = vmatprep.subr.bf16.mxu0 %v1601
    %1626 = vmatpush1.bf16.msra.mxu0 %v1600
    %1627 = vmatprep.subr.bf16.mxu0 %v1599
    %1628 = vmatpush1.bf16.msra.mxu0 %v1598
    %1629 = vmatprep.subr.bf16.mxu0 %v1597
    %1630 = vmatpush1.bf16.msra.mxu0 %v1596
    %1631 = vmatprep.subr.bf16.mxu0 0
    %1632 = vmatpush2.bf16.msra.mxu0 0
    %1633 = vmatprep.subr.bf16.mxu0 0
    %1634 = vmatpush2.bf16.msra.mxu0 0
    %1635 = vmatprep.subr.bf16.mxu0 0
    %1636 = vmatpush2.bf16.msra.mxu0 0
    %1637 = vmatprep.subr.bf16.mxu0 0
    %1638 = vmatpush2.bf16.msra.mxu0 0
    %1639 = vmatprep.subr.bf16.mxu0 0
    %1640 = vmatpush2.bf16.msra.mxu0 0
    %1641 = vmatprep.subr.bf16.mxu0 0
    %1642 = vmatpush2.bf16.msra.mxu0 0
    %1643 = vmatprep.subr.bf16.mxu0 0
    %1644 = vmatpush2.bf16.msra.mxu0 0
    %1645 = vmatprep.subr.bf16.mxu0 0
    %1646 = vmatpush2.bf16.msra.mxu0 0
    %1647 = vmatprep.mubr.bf16.mxu0 0
    %1648 = vmatmul.mubr.bf16.gmra.mxu0 %v1613
    %v1649 = vpop.f32.mrf.mxu0
    %v1650 = vadd.f32 0.0, %v1649
    %v1651 = vpop.f32.mrf.mxu0
    %v1652 = vadd.f32 0.0, %v1651
    %v1653 = vpop.f32.mrf.mxu0
    %v1654 = vpop.f32.mrf.mxu0
    %1655 = vdwg.mxu0
    %v1656 = vadd.f32 %v1558, %v1650
    %v1657 = vadd.f32 %v1559, %v1652
    %v1658 = vadd.f32 %v1656, %v785
    %v1659 = vadd.f32 %v1657, %v789
    %v1660 = vmax.f32 %v1658, 0.0
    %v1661 = vmax.f32 %v1659, 0.0
    %v1662 = vpack.c.bf16 %v1660, %v1660
    %1663 = vmatprep.subr.bf16.mxu0 0
    %1664 = vmatpush1.bf16.msra.mxu0 %v842
    %1665 = vmatprep.subr.bf16.mxu0 0
    %1666 = vmatpush1.bf16.msra.mxu0 %v841
    %1667 = vmatprep.subr.bf16.mxu0 0
    %1668 = vmatpush1.bf16.msra.mxu0 %v840
    %1669 = vmatprep.subr.bf16.mxu0 0
    %1670 = vmatpush1.bf16.msra.mxu0 %v839
    %1671 = vmatprep.subr.bf16.mxu0 0
    %1672 = vmatpush1.bf16.msra.mxu0 %v838
    %1673 = vmatprep.subr.bf16.mxu0 0
    %1674 = vmatpush1.bf16.msra.mxu0 %v837
    %1675 = vmatprep.subr.bf16.mxu0 0
    %1676 = vmatpush1.bf16.msra.mxu0 %v836
    %1677 = vmatprep.subr.bf16.mxu0 0
    %1678 = vmatpush1.bf16.msra.mxu0 %v835
    %1679 = vmatprep.subr.bf16.mxu0 0
    %1680 = vmatpush2.bf16.msra.mxu0 0
    %1681 = vmatprep.subr.bf16.mxu0 0
    %1682 = vmatpush2.bf16.msra.mxu0 0
    %1683 = vmatprep.subr.bf16.mxu0 0
    %1684 = vmatpush2.bf16.msra.mxu0 0
    %1685 = vmatprep.subr.bf16.mxu0 0
    %1686 = vmatpush2.bf16.msra.mxu0 0
    %1687 = vmatprep.subr.bf16.mxu0 0
    %1688 = vmatpush2.bf16.msra.mxu0 0
    %1689 = vmatprep.subr.bf16.mxu0 0
    %1690 = vmatpush2.bf16.msra.mxu0 0
    %1691 = vmatprep.subr.bf16.mxu0 0
    %1692 = vmatpush2.bf16.msra.mxu0 0
    %1693 = vmatprep.subr.bf16.mxu0 0
    %1694 = vmatpush2.bf16.msra.mxu0 0
    %1695 = vmatprep.mubr.bf16.mxu0 0
    %1696 = vmatmul.mubr.bf16.gmra.mxu0 %v1662
    %v1697 = vpop.f32.mrf.mxu0
    %v1698 = vadd.f32 %v801, %v1697
    %v1699 = vpop.f32.mrf.mxu0
    %v1700 = vpop.f32.mrf.mxu0
    %v1701 = vpop.f32.mrf.mxu0
    %1702 = vdwg.mxu0
    %v1703 = vmax.f32 %v1698, 0.0
    %s1704 = scalar_lea.vmem %s5, 4
    %1705 = vst [vmem:[%s1704] sm:$0x3] %v1703
    %v1706 = vpack.c.bf16 %v1661, %v1661
    %1707 = vmatprep.subr.bf16.mxu0 0
    %1708 = vmatpush1.bf16.msra.mxu0 %v842
    %1709 = vmatprep.subr.bf16.mxu0 0
    %1710 = vmatpush1.bf16.msra.mxu0 %v841
    %1711 = vmatprep.subr.bf16.mxu0 0
    %1712 = vmatpush1.bf16.msra.mxu0 %v840
    %1713 = vmatprep.subr.bf16.mxu0 0
    %1714 = vmatpush1.bf16.msra.mxu0 %v839
    %1715 = vmatprep.subr.bf16.mxu0 0
    %1716 = vmatpush1.bf16.msra.mxu0 %v838
    %1717 = vmatprep.subr.bf16.mxu0 0
    %1718 = vmatpush1.bf16.msra.mxu0 %v837
    %1719 = vmatprep.subr.bf16.mxu0 0
    %1720 = vmatpush1.bf16.msra.mxu0 %v836
    %1721 = vmatprep.subr.bf16.mxu0 0
    %1722 = vmatpush1.bf16.msra.mxu0 %v835
    %1723 = vmatprep.subr.bf16.mxu0 0
    %1724 = vmatpush2.bf16.msra.mxu0 0
    %1725 = vmatprep.subr.bf16.mxu0 0
    %1726 = vmatpush2.bf16.msra.mxu0 0
    %1727 = vmatprep.subr.bf16.mxu0 0
    %1728 = vmatpush2.bf16.msra.mxu0 0
    %1729 = vmatprep.subr.bf16.mxu0 0
    %1730 = vmatpush2.bf16.msra.mxu0 0
    %1731 = vmatprep.subr.bf16.mxu0 0
    %1732 = vmatpush2.bf16.msra.mxu0 0
    %1733 = vmatprep.subr.bf16.mxu0 0
    %1734 = vmatpush2.bf16.msra.mxu0 0
    %1735 = vmatprep.subr.bf16.mxu0 0
    %1736 = vmatpush2.bf16.msra.mxu0 0
    %1737 = vmatprep.subr.bf16.mxu0 0
    %1738 = vmatpush2.bf16.msra.mxu0 0
    %1739 = vmatprep.mubr.bf16.mxu0 0
    %1740 = vmatmul.mubr.bf16.gmra.mxu0 %v1706
    %v1741 = vpop.f32.mrf.mxu0
    %v1742 = vadd.f32 %v801, %v1741
    %v1743 = vpop.f32.mrf.mxu0
    %v1744 = vpop.f32.mrf.mxu0
    %v1745 = vpop.f32.mrf.mxu0
    %1746 = vdwg.mxu0
    %v1747 = vmax.f32 %v1742, 0.0
    %s1748 = scalar_lea.vmem %s5, 6
    %1749 = vst [vmem:[%s1748] sm:$0x3] %v1747
    // Predicated region
    $region26: #{conv_mlp_forward.1} parent=1 // pred_check
      _
    $region27: #{conv_mlp_forward.1} parent=1 // pred_check_branch
      %1751 = sbr.rel (0) target = $region29
    $region28: #{conv_mlp_forward.1} parent=1 // pred_region
      _
    $region29: #{conv_mlp_forward.1} parent=1 // pred_fallthru
      _
    // Predicated region
    $region30: #{conv_mlp_forward.1} parent=1 // pred_check
      _
    $region31: #{conv_mlp_forward.1} parent=1 // pred_check_branch
      %1753 = sbr.rel (0) target = $region33
    $region32: #{conv_mlp_forward.1} parent=1 // pred_region
      _
    $region33: #{conv_mlp_forward.1} parent=1 // pred_fallthru
      _
    %1754 = vsyncpa [#allocation3], 1

</llo_original>
